<compile_context>
chip_gen: v6e
topology: v6e:2x2x1
jax: 0.10.0
libtpu: 0.0.40
codegen_flags: <defaults>
</compile_context>

<pallas_src>
import functools
import math
from functools import partial

import jax
import jax.numpy as jnp
from jax import lax
from jax.experimental import pallas as pl
from jax.experimental.pallas import tpu as pltpu

_LN_EPS = 1e-5          # torch nn.LayerNorm default
_NEG_INF = -1e30        # additive causal-mask value


# ----------------------------------------------------------------------------
# Small math helpers (pure jnp: usable both inside kernels and in the reference)
# ----------------------------------------------------------------------------
def _layer_norm(x, w, b):
    mu = jnp.mean(x, axis=-1, keepdims=True)
    xc = x - mu
    var = jnp.mean(xc * xc, axis=-1, keepdims=True)
    return xc * lax.rsqrt(var + _LN_EPS) * w + b


def _gelu_tanh(x):
    # TODO(synk): nn.GELU() defaults to the exact erf GELU; the tanh approximation is
    # used here for robust Mosaic lowering (max deviation ~1e-3).
    c = math.sqrt(2.0 / math.pi)
    return 0.5 * x * (1.0 + jnp.tanh(c * (x + 0.044715 * x * x * x)))


def _round_up(x, m):
    return ((x + m - 1) // m) * m


def _pick_divisor_tile(n, cap):
    """Largest divisor of n that is <= cap and a multiple of 8 (else n itself)."""
    for t in range(min(n, cap), 7, -1):
        if n % t == 0 and t % 8 == 0:
            return t
    return n


@functools.lru_cache(maxsize=None)
def _vmem_limit_bytes():
    """Scoped VMEM limit: most of the physical VMEM, with headroom for the compiler."""
    try:
        cap = int(pltpu.get_tpu_info().vmem_capacity_bytes)
    except Exception:
        cap = 64 * 1024 * 1024
    return int(cap * 0.85)


@functools.lru_cache(maxsize=None)
def _single_buffer_ok():
    """Probe whether BlockSpec(pipeline_mode=pl.Buffered(1)) compiles on this JAX."""
    try:
        def _copy(x_ref, o_ref):
            o_ref[...] = x_ref[...]

        spec = pl.BlockSpec((8, 128), lambda i: (0, 0), pipeline_mode=pl.Buffered(1))
        out = pl.pallas_call(
            _copy,
            out_shape=jax.ShapeDtypeStruct((8, 128), jnp.float32),
            grid=(1,),
            in_specs=[spec],
            out_specs=pl.BlockSpec((8, 128), lambda i: (0, 0)),
        )(jnp.zeros((8, 128), jnp.float32))
        jax.block_until_ready(out)
        return True
    except Exception:
        return False


def _resident_spec(shape, index_map):
    """BlockSpec for constant-index weights: single-buffered when supported.

    The block never changes across the grid, so one buffer suffices; dropping the
    second pipeline buffer halves resident weight VMEM (important for v7x 64 MiB)."""
    if _single_buffer_ok():
        return pl.BlockSpec(shape, index_map, pipeline_mode=pl.Buffered(1))
    return pl.BlockSpec(shape, index_map)


# ----------------------------------------------------------------------------
# Fused transformer-layer kernel (attention sub-block + MLP sub-block):
#   x = x + Wo @ CausalMHA(LN1(x)) + bo
#   x = x + W2 @ GELU(W1 @ LN2(x) + b1) + b2
# One grid step = one batch element; residual stream stays in VMEM throughout.
# ----------------------------------------------------------------------------
def _layer_kernel(x_ref, ln1w_ref, ln1b_ref, wq_ref, bq_ref, wk_ref, bk_ref,
                  wv_ref, bv_ref, wo_ref, bo_ref, ln2w_ref, ln2b_ref,
                  w1_ref, b1_ref, w2_ref, b2_ref, o_ref, acc_ref,
                  *, num_heads: int):
    x = x_ref[0]                                        # [S, D] f32, this batch elem
    s_len, d_model = x.shape
    d_k = d_model // num_heads

    # ---- attention sub-block ----
    h = _layer_norm(x, ln1w_ref[...], ln1b_ref[...]).astype(jnp.bfloat16)
    # bf16 operands, f32 accumulation; 1/sqrt(d_k) pre-folded into wq/bq at init.
    q = jnp.dot(h, wq_ref[...], preferred_element_type=jnp.float32) + bq_ref[...]
    k = jnp.dot(h, wk_ref[...], preferred_element_type=jnp.float32) + bk_ref[...]
    v = jnp.dot(h, wv_ref[...], preferred_element_type=jnp.float32) + bv_ref[...]

    # Causal mask generated in-kernel (no [S, S] HBM buffer / DMA).
    row = lax.broadcasted_iota(jnp.int32, (s_len, s_len), 0)
    col = lax.broadcasted_iota(jnp.int32, (s_len, s_len), 1)
    causal = row >= col

    # Per-head attention; merged heads land lane-dense in a [S, D] VMEM scratch.
    # TODO(synk): for long sequences tile the KV axis (flash-style online softmax
    # with causal tile-skipping) and pair heads into 128-lane groups for the
    # 256-wide MXUs on v6e/v7x.
    for hd in range(num_heads):
        lo = hd * d_k
        qh = q[:, lo:lo + d_k].astype(jnp.bfloat16)
        kh = k[:, lo:lo + d_k].astype(jnp.bfloat16)
        vh = v[:, lo:lo + d_k].astype(jnp.bfloat16)
        s = lax.dot_general(qh, kh, (((1,), (1,)), ((), ())),
                            preferred_element_type=jnp.float32)     # q @ k^T
        s = jnp.where(causal, s, _NEG_INF)
        m = jnp.max(s, axis=-1, keepdims=True)
        e = jnp.exp(s - m)
        l = jnp.sum(e, axis=-1, keepdims=True)
        pv = jnp.dot(e.astype(jnp.bfloat16), vh,
                     preferred_element_type=jnp.float32)
        # post-PV normalization: [S, d_k] multiply instead of [S, S]; EUP reciprocal.
        acc_ref[:, lo:lo + d_k] = pv * pl.reciprocal(l, approx=True)

    attn = acc_ref[...].astype(jnp.bfloat16)
    x = x + jnp.dot(attn, wo_ref[...],
                    preferred_element_type=jnp.float32) + bo_ref[...]

    # ---- MLP sub-block ----
    h2 = _layer_norm(x, ln2w_ref[...], ln2b_ref[...]).astype(jnp.bfloat16)
    h1 = jnp.dot(h2, w1_ref[...], preferred_element_type=jnp.float32) + b1_ref[...]
    h1 = _gelu_tanh(h1).astype(jnp.bfloat16)             # GELU math in f32, cast after
    x = x + jnp.dot(h1, w2_ref[...],
                    preferred_element_type=jnp.float32) + b2_ref[...]

    o_ref[0] = x.astype(o_ref.dtype)


def transformer_layer(x, p, num_heads):
    b, s, d = x.shape
    f = p["w1"].shape[1]
    kernel = partial(_layer_kernel, num_heads=num_heads)

    x_spec = pl.BlockSpec((1, s, d), lambda i: (i, 0, 0))
    c1 = lambda i: (0, 0)
    vec_d = _resident_spec((1, d), c1)
    vec_f = _resident_spec((1, f), c1)
    mat_dd = _resident_spec((d, d), c1)
    mat_df = _resident_spec((d, f), c1)
    mat_fd = _resident_spec((f, d), c1)

    flops = int(b * (8 * s * d * d + 4 * s * s * d + 4 * s * d * f))
    transc = int(b * (num_heads * s * s + s * f))
    bytes_acc = int(4 * 2 * b * s * d + 2 * (4 * d * d + 2 * d * f)
                    + 4 * (6 * d + f))
    return pl.pallas_call(
        kernel,
        out_shape=jax.ShapeDtypeStruct((b, s, d), x.dtype),
        grid=(b,),
        in_specs=[x_spec,
                  vec_d, vec_d,                          # ln1
                  mat_dd, vec_d, mat_dd, vec_d,          # q, k
                  mat_dd, vec_d, mat_dd, vec_d,          # v, o
                  vec_d, vec_d,                          # ln2
                  mat_df, vec_f, mat_fd, vec_d],         # ffn
        out_specs=x_spec,
        scratch_shapes=[pltpu.VMEM((s, d), jnp.float32)],
        compiler_params=pltpu.CompilerParams(
            dimension_semantics=("parallel",),
            vmem_limit_bytes=_vmem_limit_bytes()),
        cost_estimate=pl.CostEstimate(flops=flops, transcendentals=transc,
                                      bytes_accessed=bytes_acc),
    )(x, p["ln1_w"], p["ln1_b"], p["wq"], p["bq"], p["wk"], p["bk"],
      p["wv"], p["bv"], p["wo"], p["bo"], p["ln2_w"], p["ln2_b"],
      p["w1"], p["b1"], p["w2"], p["b2"])


# ----------------------------------------------------------------------------
# Final LayerNorm fused into the tiled lm_head matmul:  logits = LN(x) @ emb^T
# LN is computed once per row tile (pl.when on the first vocab tile) and cached.
# ----------------------------------------------------------------------------
def _lm_head_kernel(x_ref, lnw_ref, lnb_ref, wt_ref, o_ref, h_ref):
    @pl.when(pl.program_id(1) == 0)
    def _():
        h_ref[...] = _layer_norm(x_ref[...], lnw_ref[...],
                                 lnb_ref[...]).astype(jnp.bfloat16)
    o_ref[...] = jnp.dot(h_ref[...], wt_ref[...],
                         preferred_element_type=jnp.float32).astype(o_ref.dtype)


def final_ln_lm_head(x2d, lnw, lnb, emb_t_pad, tn):
    n, d = x2d.shape
    v_pad = emb_t_pad.shape[1]
    # Large row tile so the [D, V_pad] table is streamed only n/tm times.
    tm = _pick_divisor_tile(n, 1024)
    c2 = lambda i, j: (0, 0)
    return pl.pallas_call(
        _lm_head_kernel,
        out_shape=jax.ShapeDtypeStruct((n, v_pad), x2d.dtype),
        grid=(n // tm, v_pad // tn),
        in_specs=[pl.BlockSpec((tm, d), lambda i, j: (i, 0)),
                  _resident_spec((1, d), c2),
                  _resident_spec((1, d), c2),
                  pl.BlockSpec((d, tn), lambda i, j: (0, j))],
        out_specs=pl.BlockSpec((tm, tn), lambda i, j: (i, j)),
        scratch_shapes=[pltpu.VMEM((tm, d), jnp.bfloat16)],
        compiler_params=pltpu.CompilerParams(
            dimension_semantics=("parallel", "arbitrary"),
            vmem_limit_bytes=_vmem_limit_bytes()),
        cost_estimate=pl.CostEstimate(
            flops=int(2 * n * d * v_pad),
            transcendentals=0,
            bytes_accessed=int(4 * (n * d + n * v_pad) + 2 * d * v_pad)),
    )(x2d, lnw, lnb, emb_t_pad)


# ----------------------------------------------------------------------------
# Module wrapper
# ----------------------------------------------------------------------------
class GPT2MetaModelPallas:
    """Pallas/TPU forward of GPT2MetaModel (eval mode: dropout = identity).

    StartBlock(..., num_repeats=num_layers) repeats ONE set of block modules, so the
    transformer-block parameters are shared across all repeats; SaveInput/GetInput
    are the standard pre-LN residual connections.

    Canonical parameters are kept in f32 (checkpoint/reference layout); the kernels
    consume bf16 copies (matmul operands) with f32 accumulation.
    """

    def __init__(self, vocab_size, d_model=768, num_heads=12, num_layers=12,
                 d_ff=3072, max_seq_len=1024, key=None):
        assert d_model % num_heads == 0
        self.vocab_size = vocab_size
        self.d_model = d_model
        self.num_heads = num_heads
        self.num_layers = num_layers
        self.d_ff = d_ff
        self.max_seq_len = max_seq_len

        if key is None:
            key = jax.random.PRNGKey(0)
        ks = jax.random.split(key, 7)
        std = 0.02  # GPT-2 init: weights ~ N(0, 0.02), biases = 0, LN = (1, 0)

        def w(k, shape):
            return std * jax.random.normal(k, shape, jnp.float32)

        def zeros(n):
            return jnp.zeros((n,), jnp.float32)

        # canonical f32 parameters (projection weights stored pre-transposed [in,out])
        self.emb = w(ks[0], (vocab_size, d_model))       # token embedding [V, D]
        self.ln1_w = jnp.ones((d_model,), jnp.float32); self.ln1_b = zeros(d_model)
        self.w_q = w(ks[1], (d_model, d_model)); self.b_q = zeros(d_model)
        self.w_k = w(ks[2], (d_model, d_model)); self.b_k = zeros(d_model)
        self.w_v = w(ks[3], (d_model, d_model)); self.b_v = zeros(d_model)
        self.w_o = w(ks[4], (d_model, d_model)); self.b_o = zeros(d_model)
        self.ln2_w = jnp.ones((d_model,), jnp.float32); self.ln2_b = zeros(d_model)
        self.w_ff1 = w(ks[5], (d_model, d_ff)); self.b_ff1 = zeros(d_ff)
        self.w_ff2 = w(ks[6], (d_ff, d_model)); self.b_ff2 = zeros(d_model)
        self.lnf_w = jnp.ones((d_model,), jnp.float32); self.lnf_b = zeros(d_model)

        # kernel copies: bf16 matmul operands (f32 accumulation), 1/sqrt(d_k) folded
        # into the Q projection, biases/LN params as [1, dim] f32 for 2-D VMEM blocks.
        inv = 1.0 / math.sqrt(d_model // num_heads)
        r = lambda a: a.reshape(1, -1)
        self._blk = dict(
            ln1_w=r(self.ln1_w), ln1_b=r(self.ln1_b),
            wq=(self.w_q * inv).astype(jnp.bfloat16), bq=r(self.b_q * inv),
            wk=self.w_k.astype(jnp.bfloat16), bk=r(self.b_k),
            wv=self.w_v.astype(jnp.bfloat16), bv=r(self.b_v),
            wo=self.w_o.astype(jnp.bfloat16), bo=r(self.b_o),
            ln2_w=r(self.ln2_w), ln2_b=r(self.ln2_b),
            w1=self.w_ff1.astype(jnp.bfloat16), b1=r(self.b_ff1),
            w2=self.w_ff2.astype(jnp.bfloat16), b2=r(self.b_ff2),
        )

        # lm_head: weight-tied, pre-transposed once, bf16, vocab padded lane-dense.
        if vocab_size > 1024:
            self.v_pad, self.lm_tn = _round_up(vocab_size, 1024), 1024
        else:
            self.v_pad = _round_up(vocab_size, 128)
            self.lm_tn = self.v_pad
        emb_t = self.emb.T.astype(jnp.bfloat16)          # [D, V]
        self.emb_t_pad = jnp.pad(emb_t, ((0, 0), (0, self.v_pad - vocab_size)))
        self.lnf_w2 = r(self.lnf_w)
        self.lnf_b2 = r(self.lnf_b)

    def __call__(self, input_ids):
        b, s = input_ids.shape
        assert s <= self.max_seq_len
        d = self.d_model
        # TODO(synk): token-embedding gather has no clean Pallas equivalent — XLA take.
        x = self.emb[input_ids]                           # [B, S, D] f32
        for _ in range(self.num_layers):                  # weight-shared repeats
            x = transformer_layer(x, self._blk, self.num_heads)
        logits = final_ln_lm_head(x.reshape(b * s, d), self.lnf_w2, self.lnf_b2,
                                  self.emb_t_pad, self.lm_tn)
        return logits.reshape(b, s, self.v_pad)[..., :self.vocab_size]


# ----------------------------------------------------------------------------
# Pure-JAX reference (f32, HIGHEST-precision matmuls) for correctness check
# ----------------------------------------------------------------------------
def reference_forward(m, input_ids):
    hp = lax.Precision.HIGHEST
    b, s = input_ids.shape
    d, hds = m.d_model, m.num_heads
    dk = d // hds
    x = m.emb[input_ids]
    causal = jnp.tril(jnp.ones((s, s), bool))
    for _ in range(m.num_layers):
        h = _layer_norm(x, m.ln1_w, m.ln1_b)
        q = (jnp.dot(h, m.w_q, precision=hp) + m.b_q).reshape(b, s, hds, dk)
        k = (jnp.dot(h, m.w_k, precision=hp) + m.b_k).reshape(b, s, hds, dk)
        v = (jnp.dot(h, m.w_v, precision=hp) + m.b_v).reshape(b, s, hds, dk)
        q, k, v = (t.transpose(0, 2, 1, 3) for t in (q, k, v))
        scores = jnp.einsum("bhqd,bhkd->bhqk", q, k, precision=hp) / math.sqrt(dk)
        scores = jnp.where(causal, scores, _NEG_INF)
        p = jax.nn.softmax(scores, axis=-1)
        attn = jnp.einsum("bhqk,bhkd->bhqd", p, v, precision=hp)
        attn = attn.transpose(0, 2, 1, 3).reshape(b, s, d)
        x = x + jnp.dot(attn, m.w_o, precision=hp) + m.b_o
        h = _layer_norm(x, m.ln2_w, m.ln2_b)
        x = x + jnp.dot(_gelu_tanh(jnp.dot(h, m.w_ff1, precision=hp) + m.b_ff1),
                        m.w_ff2, precision=hp) + m.b_ff2
    h = _layer_norm(x, m.lnf_w, m.lnf_b)
    return jnp.dot(h, m.emb.T, precision=hp)


if __name__ == "__main__":
    VOCAB, D, H, LAYERS, FF, MAXLEN = 128, 32, 4, 2, 128, 16
    B, S = 2, 8

    root = jax.random.PRNGKey(0)
    k_params, k_ids = jax.random.split(root)

    model = GPT2MetaModelPallas(vocab_size=VOCAB, d_model=D, num_heads=H,
                                num_layers=LAYERS, d_ff=FF, max_seq_len=MAXLEN,
                                key=k_params)

    input_ids = jax.random.randint(k_ids, (B, S), 0, VOCAB, dtype=jnp.int32)

    logits = jax.block_until_ready(model(input_ids))
    ref = reference_forward(model, input_ids)

    assert logits.shape == (B, S, VOCAB)
    # bf16 matmul operands (f32 accumulation) vs f32 reference: relaxed tolerance.
    max_err = float(jnp.max(jnp.abs(logits - ref)))
    assert jnp.allclose(logits, ref, atol=2e-2, rtol=2e-2), max_err

    print("KERNEL_OK")
</pallas_src>

<mosaic_0001>
module attributes {stable_mosaic.version = 11 : i64} {
  func.func @_copy(%arg0: i32, %arg1: memref<8x128xf32, #tpu.memory_space<vmem>>, %arg2: memref<8x128xf32, #tpu.memory_space<vmem>>) attributes {dimension_semantics = [#tpu.dimension_semantics<arbitrary>], iteration_bounds = array<i64: 1>, scalar_prefetch = 0 : i64, scratch_operands = 0 : i64, tpu.core_type = #tpu.core_type<tc>, window_params = [{pipeline_mode = #tpu.pipeline_mode<synchronous>, transform_indices = @transform_0, window_bounds = array<i64: 8, 128>}, {pipeline_mode = #tpu.pipeline_mode<synchronous>, transform_indices = @transform_1, window_bounds = array<i64: 8, 128>}]} {
    %c0 = arith.constant 0 : index
    %c0_0 = arith.constant 0 : index
    %0 = vector.load %arg1[%c0, %c0_0] : memref<8x128xf32, #tpu.memory_space<vmem>>, vector<8x128xf32>
    %c0_1 = arith.constant 0 : index
    %c0_2 = arith.constant 0 : index
    %1 = vector.load %arg2[%c0_1, %c0_2] : memref<8x128xf32, #tpu.memory_space<vmem>>, vector<8x128xf32>
    tpu.vector_store %arg2[%c0_1, %c0_2], %0 {strides = array<i32>} : memref<8x128xf32, #tpu.memory_space<vmem>>, vector<8x128xf32>,
    return
  }
  func.func @transform_0(%arg0: i32) -> (i32, i32) {
    %c0_i32 = arith.constant 0 : i32
    %c0_i32_0 = arith.constant 0 : i32
    %c0_i32_1 = arith.constant 0 : i32
    return %c0_i32, %c0_i32_0 : i32, i32
  }
  func.func @transform_1(%arg0: i32) -> (i32, i32) {
    %c0_i32 = arith.constant 0 : i32
    %c0_i32_0 = arith.constant 0 : i32
    %c0_i32_1 = arith.constant 0 : i32
    return %c0_i32, %c0_i32_0 : i32, i32
  }
}

module attributes {stable_mosaic.version = 11 : i64} {
  func.func @_layer_kernel(%arg0: i32, %arg1: memref<1x8x32xf32, #tpu.memory_space<vmem>>, %arg2: memref<1x32xf32, #tpu.memory_space<vmem>>, %arg3: memref<1x32xf32, #tpu.memory_space<vmem>>, %arg4: memref<32x32xbf16, #tpu.memory_space<vmem>>, %arg5: memref<1x32xf32, #tpu.memory_space<vmem>>, %arg6: memref<32x32xbf16, #tpu.memory_space<vmem>>, %arg7: memref<1x32xf32, #tpu.memory_space<vmem>>, %arg8: memref<32x32xbf16, #tpu.memory_space<vmem>>, %arg9: memref<1x32xf32, #tpu.memory_space<vmem>>, %arg10: memref<32x32xbf16, #tpu.memory_space<vmem>>, %arg11: memref<1x32xf32, #tpu.memory_space<vmem>>, %arg12: memref<1x32xf32, #tpu.memory_space<vmem>>, %arg13: memref<1x32xf32, #tpu.memory_space<vmem>>, %arg14: memref<32x128xbf16, #tpu.memory_space<vmem>>, %arg15: memref<1x128xf32, #tpu.memory_space<vmem>>, %arg16: memref<128x32xbf16, #tpu.memory_space<vmem>>, %arg17: memref<1x32xf32, #tpu.memory_space<vmem>>, %arg18: memref<1x8x32xf32, #tpu.memory_space<vmem>>, %arg19: memref<8x32xf32, #tpu.memory_space<vmem>>) attributes {dimension_semantics = [#tpu.dimension_semantics<parallel>], iteration_bounds = array<i64: 2>, scalar_prefetch = 0 : i64, scratch_operands = 1 : i64, tpu.core_type = #tpu.core_type<tc>, window_params = [{transform_indices = @transform_0, window_bounds = array<i64: 1, 8, 32>}, {pipeline_mode = #tpu.pipeline_mode<synchronous>, transform_indices = @transform_1, window_bounds = array<i64: 1, 32>}, {pipeline_mode = #tpu.pipeline_mode<synchronous>, transform_indices = @transform_2, window_bounds = array<i64: 1, 32>}, {pipeline_mode = #tpu.pipeline_mode<synchronous>, transform_indices = @transform_3, window_bounds = array<i64: 32, 32>}, {pipeline_mode = #tpu.pipeline_mode<synchronous>, transform_indices = @transform_4, window_bounds = array<i64: 1, 32>}, {pipeline_mode = #tpu.pipeline_mode<synchronous>, transform_indices = @transform_5, window_bounds = array<i64: 32, 32>}, {pipeline_mode = #tpu.pipeline_mode<synchronous>, transform_indices = @transform_6, window_bounds = array<i64: 1, 32>}, {pipeline_mode = #tpu.pipeline_mode<synchronous>, transform_indices = @transform_7, window_bounds = array<i64: 32, 32>}, {pipeline_mode = #tpu.pipeline_mode<synchronous>, transform_indices = @transform_8, window_bounds = array<i64: 1, 32>}, {pipeline_mode = #tpu.pipeline_mode<synchronous>, transform_indices = @transform_9, window_bounds = array<i64: 32, 32>}, {pipeline_mode = #tpu.pipeline_mode<synchronous>, transform_indices = @transform_10, window_bounds = array<i64: 1, 32>}, {pipeline_mode = #tpu.pipeline_mode<synchronous>, transform_indices = @transform_11, window_bounds = array<i64: 1, 32>}, {pipeline_mode = #tpu.pipeline_mode<synchronous>, transform_indices = @transform_12, window_bounds = array<i64: 1, 32>}, {pipeline_mode = #tpu.pipeline_mode<synchronous>, transform_indices = @transform_13, window_bounds = array<i64: 32, 128>}, {pipeline_mode = #tpu.pipeline_mode<synchronous>, transform_indices = @transform_14, window_bounds = array<i64: 1, 128>}, {pipeline_mode = #tpu.pipeline_mode<synchronous>, transform_indices = @transform_15, window_bounds = array<i64: 128, 32>}, {pipeline_mode = #tpu.pipeline_mode<synchronous>, transform_indices = @transform_16, window_bounds = array<i64: 1, 32>}, {transform_indices = @transform_17, window_bounds = array<i64: 1, 8, 32>}]} {
    %c0 = arith.constant 0 : index
    %c0_0 = arith.constant 0 : index
    %c0_1 = arith.constant 0 : index
    %0 = vector.load %arg1[%c0, %c0_0, %c0_1] : memref<1x8x32xf32, #tpu.memory_space<vmem>>, vector<1x8x32xf32>
    %1 = vector.shape_cast %0 : vector<1x8x32xf32> to vector<8x32xf32>
    %c0_2 = arith.constant 0 : index
    %c0_3 = arith.constant 0 : index
    %2 = vector.load %arg2[%c0_2, %c0_3] : memref<1x32xf32, #tpu.memory_space<vmem>>, vector<1x32xf32>
    %c0_4 = arith.constant 0 : index
    %c0_5 = arith.constant 0 : index
    %3 = vector.load %arg3[%c0_4, %c0_5] : memref<1x32xf32, #tpu.memory_space<vmem>>, vector<1x32xf32>
    %cst = arith.constant dense<0.000000e+00> : vector<8xf32>
    %4 = vector.multi_reduction <add>, %1, %cst [1] : vector<8x32xf32> to vector<8xf32>
    %5 = vector.shape_cast %4 : vector<8xf32> to vector<8x1xf32>
    %cst_6 = arith.constant 3.200000e+01 : f32
    %6 = vector.broadcast %cst_6 : f32 to vector<8x1xf32>
    %7 = arith.divf %5, %6 : vector<8x1xf32>
    %8 = vector.broadcast %7 : vector<8x1xf32> to vector<8x32xf32>
    %9 = arith.subf %1, %8 : vector<8x32xf32>
    %10 = arith.mulf %9, %9 : vector<8x32xf32>
    %cst_7 = arith.constant dense<0.000000e+00> : vector<8xf32>
    %11 = vector.multi_reduction <add>, %10, %cst_7 [1] : vector<8x32xf32> to vector<8xf32>
    %12 = vector.shape_cast %11 : vector<8xf32> to vector<8x1xf32>
    %cst_8 = arith.constant 3.200000e+01 : f32
    %13 = vector.broadcast %cst_8 : f32 to vector<8x1xf32>
    %14 = arith.divf %12, %13 : vector<8x1xf32>
    %cst_9 = arith.constant 9.99999974E-6 : f32
    %15 = vector.broadcast %cst_9 : f32 to vector<8x1xf32>
    %16 = arith.addf %14, %15 : vector<8x1xf32>
    %17 = math.rsqrt %16 : vector<8x1xf32>
    %18 = vector.broadcast %17 : vector<8x1xf32> to vector<8x32xf32>
    %19 = arith.mulf %9, %18 : vector<8x32xf32>
    %20 = vector.broadcast %2 : vector<1x32xf32> to vector<8x32xf32>
    %21 = arith.mulf %19, %20 : vector<8x32xf32>
    %22 = vector.broadcast %3 : vector<1x32xf32> to vector<8x32xf32>
    %23 = arith.addf %21, %22 : vector<8x32xf32>
    %24 = arith.truncf %23 : vector<8x32xf32> to vector<8x32xbf16>
    %c0_10 = arith.constant 0 : index
    %c0_11 = arith.constant 0 : index
    %25 = vector.load %arg4[%c0_10, %c0_11] : memref<32x32xbf16, #tpu.memory_space<vmem>>, vector<32x32xbf16>
    %cst_12 = arith.constant dense<0.000000e+00> : vector<8x32xf32>
    %26 = tpu.matmul %24, %25, %cst_12 {dimension_numbers = #tpu.dot_dimension_numbers<[1], [0], [0], [1], [0, 0, 1, 1], [], []>} : vector<8x32xbf16>, vector<32x32xbf16>, vector<8x32xf32> -> vector<8x32xf32>
    %c0_13 = arith.constant 0 : index
    %c0_14 = arith.constant 0 : index
    %27 = vector.load %arg5[%c0_13, %c0_14] : memref<1x32xf32, #tpu.memory_space<vmem>>, vector<1x32xf32>
    %28 = vector.broadcast %27 : vector<1x32xf32> to vector<8x32xf32>
    %29 = arith.addf %26, %28 : vector<8x32xf32>
    %c0_15 = arith.constant 0 : index
    %c0_16 = arith.constant 0 : index
    %30 = vector.load %arg6[%c0_15, %c0_16] : memref<32x32xbf16, #tpu.memory_space<vmem>>, vector<32x32xbf16>
    %cst_17 = arith.constant dense<0.000000e+00> : vector<8x32xf32>
    %31 = tpu.matmul %24, %30, %cst_17 {dimension_numbers = #tpu.dot_dimension_numbers<[1], [0], [0], [1], [0, 0, 1, 1], [], []>} : vector<8x32xbf16>, vector<32x32xbf16>, vector<8x32xf32> -> vector<8x32xf32>
    %c0_18 = arith.constant 0 : index
    %c0_19 = arith.constant 0 : index
    %32 = vector.load %arg7[%c0_18, %c0_19] : memref<1x32xf32, #tpu.memory_space<vmem>>, vector<1x32xf32>
    %33 = vector.broadcast %32 : vector<1x32xf32> to vector<8x32xf32>
    %34 = arith.addf %31, %33 : vector<8x32xf32>
    %c0_20 = arith.constant 0 : index
    %c0_21 = arith.constant 0 : index
    %35 = vector.load %arg8[%c0_20, %c0_21] : memref<32x32xbf16, #tpu.memory_space<vmem>>, vector<32x32xbf16>
    %cst_22 = arith.constant dense<0.000000e+00> : vector<8x32xf32>
    %36 = tpu.matmul %24, %35, %cst_22 {dimension_numbers = #tpu.dot_dimension_numbers<[1], [0], [0], [1], [0, 0, 1, 1], [], []>} : vector<8x32xbf16>, vector<32x32xbf16>, vector<8x32xf32> -> vector<8x32xf32>
    %c0_23 = arith.constant 0 : index
    %c0_24 = arith.constant 0 : index
    %37 = vector.load %arg9[%c0_23, %c0_24] : memref<1x32xf32, #tpu.memory_space<vmem>>, vector<1x32xf32>
    %38 = vector.broadcast %37 : vector<1x32xf32> to vector<8x32xf32>
    %39 = arith.addf %36, %38 : vector<8x32xf32>
    %40 = tpu.iota {dimensions = array<i32: 0>} : vector<8x8xi32>
    %41 = tpu.iota {dimensions = array<i32: 1>} : vector<8x8xi32>
    %42 = arith.cmpi sge, %40, %41 : vector<8x8xi32>
    %43 = vector.extract_strided_slice %29 {offsets = [0, 0], sizes = [8, 8], strides = [1, 1]} : vector<8x32xf32> to vector<8x8xf32>
    %44 = arith.truncf %43 : vector<8x8xf32> to vector<8x8xbf16>
    %45 = vector.extract_strided_slice %34 {offsets = [0, 0], sizes = [8, 8], strides = [1, 1]} : vector<8x32xf32> to vector<8x8xf32>
    %46 = arith.truncf %45 : vector<8x8xf32> to vector<8x8xbf16>
    %47 = vector.extract_strided_slice %39 {offsets = [0, 0], sizes = [8, 8], strides = [1, 1]} : vector<8x32xf32> to vector<8x8xf32>
    %48 = arith.truncf %47 : vector<8x8xf32> to vector<8x8xbf16>
    %cst_25 = arith.constant dense<0.000000e+00> : vector<8x8xf32>
    %49 = tpu.matmul %44, %46, %cst_25 {dimension_numbers = #tpu.dot_dimension_numbers<[1], [1], [0], [0], [0, 0, 1, 0], [], []>} : vector<8x8xbf16>, vector<8x8xbf16>, vector<8x8xf32> -> vector<8x8xf32>
    %cst_26 = arith.constant -1.000000e+30 : f32
    %50 = vector.broadcast %cst_26 : f32 to vector<8x8xf32>
    %51 = arith.select %42, %49, %50 : vector<8x8xi1>, vector<8x8xf32>
    %cst_27 = arith.constant dense<0xFF800000> : vector<8xf32>
    %52 = vector.multi_reduction <maximumf>, %51, %cst_27 [1] : vector<8x8xf32> to vector<8xf32>
    %53 = vector.shape_cast %52 : vector<8xf32> to vector<8x1xf32>
    %54 = vector.broadcast %53 : vector<8x1xf32> to vector<8x8xf32>
    %55 = arith.subf %51, %54 : vector<8x8xf32>
    %56 = math.exp %55 : vector<8x8xf32>
    %cst_28 = arith.constant dense<0.000000e+00> : vector<8xf32>
    %57 = vector.multi_reduction <add>, %56, %cst_28 [1] : vector<8x8xf32> to vector<8xf32>
    %58 = vector.shape_cast %57 : vector<8xf32> to vector<8x1xf32>
    %59 = arith.truncf %56 : vector<8x8xf32> to vector<8x8xbf16>
    %cst_29 = arith.constant dense<0.000000e+00> : vector<8x8xf32>
    %60 = tpu.matmul %59, %48, %cst_29 {dimension_numbers = #tpu.dot_dimension_numbers<[1], [0], [0], [1], [0, 0, 1, 1], [], []>} : vector<8x8xbf16>, vector<8x8xbf16>, vector<8x8xf32> -> vector<8x8xf32>
    %61 = tpu.reciprocal %58 {approx = true} : vector<8x1xf32> -> vector<8x1xf32>
    %62 = vector.broadcast %61 : vector<8x1xf32> to vector<8x8xf32>
    %63 = arith.mulf %60, %62 : vector<8x8xf32>
    %c0_30 = arith.constant 0 : index
    %c0_31 = arith.constant 0 : index
    %64 = vector.load %arg19[%c0_30, %c0_31] : memref<8x32xf32, #tpu.memory_space<vmem>>, vector<8x8xf32>
    tpu.vector_store %arg19[%c0_30, %c0_31], %63 {strides = array<i32>} : memref<8x32xf32, #tpu.memory_space<vmem>>, vector<8x8xf32>,
    %65 = vector.extract_strided_slice %29 {offsets = [0, 8], sizes = [8, 8], strides = [1, 1]} : vector<8x32xf32> to vector<8x8xf32>
    %66 = arith.truncf %65 : vector<8x8xf32> to vector<8x8xbf16>
    %67 = vector.extract_strided_slice %34 {offsets = [0, 8], sizes = [8, 8], strides = [1, 1]} : vector<8x32xf32> to vector<8x8xf32>
    %68 = arith.truncf %67 : vector<8x8xf32> to vector<8x8xbf16>
    %69 = vector.extract_strided_slice %39 {offsets = [0, 8], sizes = [8, 8], strides = [1, 1]} : vector<8x32xf32> to vector<8x8xf32>
    %70 = arith.truncf %69 : vector<8x8xf32> to vector<8x8xbf16>
    %cst_32 = arith.constant dense<0.000000e+00> : vector<8x8xf32>
    %71 = tpu.matmul %66, %68, %cst_32 {dimension_numbers = #tpu.dot_dimension_numbers<[1], [1], [0], [0], [0, 0, 1, 0], [], []>} : vector<8x8xbf16>, vector<8x8xbf16>, vector<8x8xf32> -> vector<8x8xf32>
    %cst_33 = arith.constant -1.000000e+30 : f32
    %72 = vector.broadcast %cst_33 : f32 to vector<8x8xf32>
    %73 = arith.select %42, %71, %72 : vector<8x8xi1>, vector<8x8xf32>
    %cst_34 = arith.constant dense<0xFF800000> : vector<8xf32>
    %74 = vector.multi_reduction <maximumf>, %73, %cst_34 [1] : vector<8x8xf32> to vector<8xf32>
    %75 = vector.shape_cast %74 : vector<8xf32> to vector<8x1xf32>
    %76 = vector.broadcast %75 : vector<8x1xf32> to vector<8x8xf32>
    %77 = arith.subf %73, %76 : vector<8x8xf32>
    %78 = math.exp %77 : vector<8x8xf32>
    %cst_35 = arith.constant dense<0.000000e+00> : vector<8xf32>
    %79 = vector.multi_reduction <add>, %78, %cst_35 [1] : vector<8x8xf32> to vector<8xf32>
    %80 = vector.shape_cast %79 : vector<8xf32> to vector<8x1xf32>
    %81 = arith.truncf %78 : vector<8x8xf32> to vector<8x8xbf16>
    %cst_36 = arith.constant dense<0.000000e+00> : vector<8x8xf32>
    %82 = tpu.matmul %81, %70, %cst_36 {dimension_numbers = #tpu.dot_dimension_numbers<[1], [0], [0], [1], [0, 0, 1, 1], [], []>} : vector<8x8xbf16>, vector<8x8xbf16>, vector<8x8xf32> -> vector<8x8xf32>
    %83 = tpu.reciprocal %80 {approx = true} : vector<8x1xf32> -> vector<8x1xf32>
    %84 = vector.broadcast %83 : vector<8x1xf32> to vector<8x8xf32>
    %85 = arith.mulf %82, %84 : vector<8x8xf32>
    %c0_37 = arith.constant 0 : index
    %c8 = arith.constant 8 : index
    %86 = vector.load %arg19[%c0_37, %c8] : memref<8x32xf32, #tpu.memory_space<vmem>>, vector<8x8xf32>
    tpu.vector_store %arg19[%c0_37, %c8], %85 {strides = array<i32>} : memref<8x32xf32, #tpu.memory_space<vmem>>, vector<8x8xf32>,
    %87 = vector.extract_strided_slice %29 {offsets = [0, 16], sizes = [8, 8], strides = [1, 1]} : vector<8x32xf32> to vector<8x8xf32>
    %88 = arith.truncf %87 : vector<8x8xf32> to vector<8x8xbf16>
    %89 = vector.extract_strided_slice %34 {offsets = [0, 16], sizes = [8, 8], strides = [1, 1]} : vector<8x32xf32> to vector<8x8xf32>
    %90 = arith.truncf %89 : vector<8x8xf32> to vector<8x8xbf16>
    %91 = vector.extract_strided_slice %39 {offsets = [0, 16], sizes = [8, 8], strides = [1, 1]} : vector<8x32xf32> to vector<8x8xf32>
    %92 = arith.truncf %91 : vector<8x8xf32> to vector<8x8xbf16>
    %cst_38 = arith.constant dense<0.000000e+00> : vector<8x8xf32>
    %93 = tpu.matmul %88, %90, %cst_38 {dimension_numbers = #tpu.dot_dimension_numbers<[1], [1], [0], [0], [0, 0, 1, 0], [], []>} : vector<8x8xbf16>, vector<8x8xbf16>, vector<8x8xf32> -> vector<8x8xf32>
    %cst_39 = arith.constant -1.000000e+30 : f32
    %94 = vector.broadcast %cst_39 : f32 to vector<8x8xf32>
    %95 = arith.select %42, %93, %94 : vector<8x8xi1>, vector<8x8xf32>
    %cst_40 = arith.constant dense<0xFF800000> : vector<8xf32>
    %96 = vector.multi_reduction <maximumf>, %95, %cst_40 [1] : vector<8x8xf32> to vector<8xf32>
    %97 = vector.shape_cast %96 : vector<8xf32> to vector<8x1xf32>
    %98 = vector.broadcast %97 : vector<8x1xf32> to vector<8x8xf32>
    %99 = arith.subf %95, %98 : vector<8x8xf32>
    %100 = math.exp %99 : vector<8x8xf32>
    %cst_41 = arith.constant dense<0.000000e+00> : vector<8xf32>
    %101 = vector.multi_reduction <add>, %100, %cst_41 [1] : vector<8x8xf32> to vector<8xf32>
    %102 = vector.shape_cast %101 : vector<8xf32> to vector<8x1xf32>
    %103 = arith.truncf %100 : vector<8x8xf32> to vector<8x8xbf16>
    %cst_42 = arith.constant dense<0.000000e+00> : vector<8x8xf32>
    %104 = tpu.matmul %103, %92, %cst_42 {dimension_numbers = #tpu.dot_dimension_numbers<[1], [0], [0], [1], [0, 0, 1, 1], [], []>} : vector<8x8xbf16>, vector<8x8xbf16>, vector<8x8xf32> -> vector<8x8xf32>
    %105 = tpu.reciprocal %102 {approx = true} : vector<8x1xf32> -> vector<8x1xf32>
    %106 = vector.broadcast %105 : vector<8x1xf32> to vector<8x8xf32>
    %107 = arith.mulf %104, %106 : vector<8x8xf32>
    %c0_43 = arith.constant 0 : index
    %c16 = arith.constant 16 : index
    %108 = vector.load %arg19[%c0_43, %c16] : memref<8x32xf32, #tpu.memory_space<vmem>>, vector<8x8xf32>
    tpu.vector_store %arg19[%c0_43, %c16], %107 {strides = array<i32>} : memref<8x32xf32, #tpu.memory_space<vmem>>, vector<8x8xf32>,
    %109 = vector.extract_strided_slice %29 {offsets = [0, 24], sizes = [8, 8], strides = [1, 1]} : vector<8x32xf32> to vector<8x8xf32>
    %110 = arith.truncf %109 : vector<8x8xf32> to vector<8x8xbf16>
    %111 = vector.extract_strided_slice %34 {offsets = [0, 24], sizes = [8, 8], strides = [1, 1]} : vector<8x32xf32> to vector<8x8xf32>
    %112 = arith.truncf %111 : vector<8x8xf32> to vector<8x8xbf16>
    %113 = vector.extract_strided_slice %39 {offsets = [0, 24], sizes = [8, 8], strides = [1, 1]} : vector<8x32xf32> to vector<8x8xf32>
    %114 = arith.truncf %113 : vector<8x8xf32> to vector<8x8xbf16>
    %cst_44 = arith.constant dense<0.000000e+00> : vector<8x8xf32>
    %115 = tpu.matmul %110, %112, %cst_44 {dimension_numbers = #tpu.dot_dimension_numbers<[1], [1], [0], [0], [0, 0, 1, 0], [], []>} : vector<8x8xbf16>, vector<8x8xbf16>, vector<8x8xf32> -> vector<8x8xf32>
    %cst_45 = arith.constant -1.000000e+30 : f32
    %116 = vector.broadcast %cst_45 : f32 to vector<8x8xf32>
    %117 = arith.select %42, %115, %116 : vector<8x8xi1>, vector<8x8xf32>
    %cst_46 = arith.constant dense<0xFF800000> : vector<8xf32>
    %118 = vector.multi_reduction <maximumf>, %117, %cst_46 [1] : vector<8x8xf32> to vector<8xf32>
    %119 = vector.shape_cast %118 : vector<8xf32> to vector<8x1xf32>
    %120 = vector.broadcast %119 : vector<8x1xf32> to vector<8x8xf32>
    %121 = arith.subf %117, %120 : vector<8x8xf32>
    %122 = math.exp %121 : vector<8x8xf32>
    %cst_47 = arith.constant dense<0.000000e+00> : vector<8xf32>
    %123 = vector.multi_reduction <add>, %122, %cst_47 [1] : vector<8x8xf32> to vector<8xf32>
    %124 = vector.shape_cast %123 : vector<8xf32> to vector<8x1xf32>
    %125 = arith.truncf %122 : vector<8x8xf32> to vector<8x8xbf16>
    %cst_48 = arith.constant dense<0.000000e+00> : vector<8x8xf32>
    %126 = tpu.matmul %125, %114, %cst_48 {dimension_numbers = #tpu.dot_dimension_numbers<[1], [0], [0], [1], [0, 0, 1, 1], [], []>} : vector<8x8xbf16>, vector<8x8xbf16>, vector<8x8xf32> -> vector<8x8xf32>
    %127 = tpu.reciprocal %124 {approx = true} : vector<8x1xf32> -> vector<8x1xf32>
    %128 = vector.broadcast %127 : vector<8x1xf32> to vector<8x8xf32>
    %129 = arith.mulf %126, %128 : vector<8x8xf32>
    %c0_49 = arith.constant 0 : index
    %c24 = arith.constant 24 : index
    %130 = vector.load %arg19[%c0_49, %c24] : memref<8x32xf32, #tpu.memory_space<vmem>>, vector<8x8xf32>
    tpu.vector_store %arg19[%c0_49, %c24], %129 {strides = array<i32>} : memref<8x32xf32, #tpu.memory_space<vmem>>, vector<8x8xf32>,
    %c0_50 = arith.constant 0 : index
    %c0_51 = arith.constant 0 : index
    %131 = vector.load %arg19[%c0_50, %c0_51] : memref<8x32xf32, #tpu.memory_space<vmem>>, vector<8x32xf32>
    %132 = arith.truncf %131 : vector<8x32xf32> to vector<8x32xbf16>
    %c0_52 = arith.constant 0 : index
    %c0_53 = arith.constant 0 : index
    %133 = vector.load %arg10[%c0_52, %c0_53] : memref<32x32xbf16, #tpu.memory_space<vmem>>, vector<32x32xbf16>
    %cst_54 = arith.constant dense<0.000000e+00> : vector<8x32xf32>
    %134 = tpu.matmul %132, %133, %cst_54 {dimension_numbers = #tpu.dot_dimension_numbers<[1], [0], [0], [1], [0, 0, 1, 1], [], []>} : vector<8x32xbf16>, vector<32x32xbf16>, vector<8x32xf32> -> vector<8x32xf32>
    %135 = arith.addf %1, %134 : vector<8x32xf32>
    %c0_55 = arith.constant 0 : index
    %c0_56 = arith.constant 0 : index
    %136 = vector.load %arg11[%c0_55, %c0_56] : memref<1x32xf32, #tpu.memory_space<vmem>>, vector<1x32xf32>
    %137 = vector.broadcast %136 : vector<1x32xf32> to vector<8x32xf32>
    %138 = arith.addf %135, %137 : vector<8x32xf32>
    %c0_57 = arith.constant 0 : index
    %c0_58 = arith.constant 0 : index
    %139 = vector.load %arg12[%c0_57, %c0_58] : memref<1x32xf32, #tpu.memory_space<vmem>>, vector<1x32xf32>
    %c0_59 = arith.constant 0 : index
    %c0_60 = arith.constant 0 : index
    %140 = vector.load %arg13[%c0_59, %c0_60] : memref<1x32xf32, #tpu.memory_space<vmem>>, vector<1x32xf32>
    %cst_61 = arith.constant dense<0.000000e+00> : vector<8xf32>
    %141 = vector.multi_reduction <add>, %138, %cst_61 [1] : vector<8x32xf32> to vector<8xf32>
    %142 = vector.shape_cast %141 : vector<8xf32> to vector<8x1xf32>
    %cst_62 = arith.constant 3.200000e+01 : f32
    %143 = vector.broadcast %cst_62 : f32 to vector<8x1xf32>
    %144 = arith.divf %142, %143 : vector<8x1xf32>
    %145 = vector.broadcast %144 : vector<8x1xf32> to vector<8x32xf32>
    %146 = arith.subf %138, %145 : vector<8x32xf32>
    %147 = arith.mulf %146, %146 : vector<8x32xf32>
    %cst_63 = arith.constant dense<0.000000e+00> : vector<8xf32>
    %148 = vector.multi_reduction <add>, %147, %cst_63 [1] : vector<8x32xf32> to vector<8xf32>
    %149 = vector.shape_cast %148 : vector<8xf32> to vector<8x1xf32>
    %cst_64 = arith.constant 3.200000e+01 : f32
    %150 = vector.broadcast %cst_64 : f32 to vector<8x1xf32>
    %151 = arith.divf %149, %150 : vector<8x1xf32>
    %cst_65 = arith.constant 9.99999974E-6 : f32
    %152 = vector.broadcast %cst_65 : f32 to vector<8x1xf32>
    %153 = arith.addf %151, %152 : vector<8x1xf32>
    %154 = math.rsqrt %153 : vector<8x1xf32>
    %155 = vector.broadcast %154 : vector<8x1xf32> to vector<8x32xf32>
    %156 = arith.mulf %146, %155 : vector<8x32xf32>
    %157 = vector.broadcast %139 : vector<1x32xf32> to vector<8x32xf32>
    %158 = arith.mulf %156, %157 : vector<8x32xf32>
    %159 = vector.broadcast %140 : vector<1x32xf32> to vector<8x32xf32>
    %160 = arith.addf %158, %159 : vector<8x32xf32>
    %161 = arith.truncf %160 : vector<8x32xf32> to vector<8x32xbf16>
    %c0_66 = arith.constant 0 : index
    %c0_67 = arith.constant 0 : index
    %162 = vector.load %arg14[%c0_66, %c0_67] : memref<32x128xbf16, #tpu.memory_space<vmem>>, vector<32x128xbf16>
    %cst_68 = arith.constant dense<0.000000e+00> : vector<8x128xf32>
    %163 = tpu.matmul %161, %162, %cst_68 {dimension_numbers = #tpu.dot_dimension_numbers<[1], [0], [0], [1], [0, 0, 1, 1], [], []>} : vector<8x32xbf16>, vector<32x128xbf16>, vector<8x128xf32> -> vector<8x128xf32>
    %c0_69 = arith.constant 0 : index
    %c0_70 = arith.constant 0 : index
    %164 = vector.load %arg15[%c0_69, %c0_70] : memref<1x128xf32, #tpu.memory_space<vmem>>, vector<1x128xf32>
    %165 = vector.broadcast %164 : vector<1x128xf32> to vector<8x128xf32>
    %166 = arith.addf %163, %165 : vector<8x128xf32>
    %cst_71 = arith.constant 5.000000e-01 : f32
    %167 = vector.broadcast %cst_71 : f32 to vector<8x128xf32>
    %168 = arith.mulf %167, %166 : vector<8x128xf32>
    %cst_72 = arith.constant 4.471500e-02 : f32
    %169 = vector.broadcast %cst_72 : f32 to vector<8x128xf32>
    %170 = arith.mulf %169, %166 : vector<8x128xf32>
    %171 = arith.mulf %170, %166 : vector<8x128xf32>
    %172 = arith.mulf %171, %166 : vector<8x128xf32>
    %173 = arith.addf %166, %172 : vector<8x128xf32>
    %cst_73 = arith.constant 0.797884583 : f32
    %174 = vector.broadcast %cst_73 : f32 to vector<8x128xf32>
    %175 = arith.mulf %174, %173 : vector<8x128xf32>
    %176 = math.tanh %175 : vector<8x128xf32>
    %cst_74 = arith.constant 1.000000e+00 : f32
    %177 = vector.broadcast %cst_74 : f32 to vector<8x128xf32>
    %178 = arith.addf %177, %176 : vector<8x128xf32>
    %179 = arith.mulf %168, %178 : vector<8x128xf32>
    %180 = arith.truncf %179 : vector<8x128xf32> to vector<8x128xbf16>
    %c0_75 = arith.constant 0 : index
    %c0_76 = arith.constant 0 : index
    %181 = vector.load %arg16[%c0_75, %c0_76] : memref<128x32xbf16, #tpu.memory_space<vmem>>, vector<128x32xbf16>
    %cst_77 = arith.constant dense<0.000000e+00> : vector<8x32xf32>
    %182 = tpu.matmul %180, %181, %cst_77 {dimension_numbers = #tpu.dot_dimension_numbers<[1], [0], [0], [1], [0, 0, 1, 1], [], []>} : vector<8x128xbf16>, vector<128x32xbf16>, vector<8x32xf32> -> vector<8x32xf32>
    %183 = arith.addf %138, %182 : vector<8x32xf32>
    %c0_78 = arith.constant 0 : index
    %c0_79 = arith.constant 0 : index
    %184 = vector.load %arg17[%c0_78, %c0_79] : memref<1x32xf32, #tpu.memory_space<vmem>>, vector<1x32xf32>
    %185 = vector.broadcast %184 : vector<1x32xf32> to vector<8x32xf32>
    %186 = arith.addf %183, %185 : vector<8x32xf32>
    %c0_80 = arith.constant 0 : index
    %c0_81 = arith.constant 0 : index
    %c0_82 = arith.constant 0 : index
    %187 = vector.load %arg18[%c0_80, %c0_81, %c0_82] : memref<1x8x32xf32, #tpu.memory_space<vmem>>, vector<1x8x32xf32>
    %188 = vector.shape_cast %187 : vector<1x8x32xf32> to vector<8x32xf32>
    %189 = vector.shape_cast %186 : vector<8x32xf32> to vector<1x8x32xf32>
    tpu.vector_store %arg18[%c0_80, %c0_81, %c0_82], %189 {strides = array<i32>} : memref<1x8x32xf32, #tpu.memory_space<vmem>>, vector<1x8x32xf32>,
    return
  }
  func.func @transform_0(%arg0: i32) -> (i32, i32, i32) {
    %c0_i32 = arith.constant 0 : i32
    %c0_i32_0 = arith.constant 0 : i32
    %c0_i32_1 = arith.constant 0 : i32
    return %arg0, %c0_i32, %c0_i32_0 : i32, i32, i32
  }
  func.func @transform_1(%arg0: i32) -> (i32, i32) {
    %c0_i32 = arith.constant 0 : i32
    %c0_i32_0 = arith.constant 0 : i32
    %c0_i32_1 = arith.constant 0 : i32
    return %c0_i32, %c0_i32_0 : i32, i32
  }
  func.func @transform_2(%arg0: i32) -> (i32, i32) {
    %c0_i32 = arith.constant 0 : i32
    %c0_i32_0 = arith.constant 0 : i32
    %c0_i32_1 = arith.constant 0 : i32
    return %c0_i32, %c0_i32_0 : i32, i32
  }
  func.func @transform_3(%arg0: i32) -> (i32, i32) {
    %c0_i32 = arith.constant 0 : i32
    %c0_i32_0 = arith.constant 0 : i32
    %c0_i32_1 = arith.constant 0 : i32
    return %c0_i32, %c0_i32_0 : i32, i32
  }
  func.func @transform_4(%arg0: i32) -> (i32, i32) {
    %c0_i32 = arith.constant 0 : i32
    %c0_i32_0 = arith.constant 0 : i32
    %c0_i32_1 = arith.constant 0 : i32
    return %c0_i32, %c0_i32_0 : i32, i32
  }
  func.func @transform_5(%arg0: i32) -> (i32, i32) {
    %c0_i32 = arith.constant 0 : i32
    %c0_i32_0 = arith.constant 0 : i32
    %c0_i32_1 = arith.constant 0 : i32
    return %c0_i32, %c0_i32_0 : i32, i32
  }
  func.func @transform_6(%arg0: i32) -> (i32, i32) {
    %c0_i32 = arith.constant 0 : i32
    %c0_i32_0 = arith.constant 0 : i32
    %c0_i32_1 = arith.constant 0 : i32
    return %c0_i32, %c0_i32_0 : i32, i32
  }
  func.func @transform_7(%arg0: i32) -> (i32, i32) {
    %c0_i32 = arith.constant 0 : i32
    %c0_i32_0 = arith.constant 0 : i32
    %c0_i32_1 = arith.constant 0 : i32
    return %c0_i32, %c0_i32_0 : i32, i32
  }
  func.func @transform_8(%arg0: i32) -> (i32, i32) {
    %c0_i32 = arith.constant 0 : i32
    %c0_i32_0 = arith.constant 0 : i32
    %c0_i32_1 = arith.constant 0 : i32
    return %c0_i32, %c0_i32_0 : i32, i32
  }
  func.func @transform_9(%arg0: i32) -> (i32, i32) {
    %c0_i32 = arith.constant 0 : i32
    %c0_i32_0 = arith.constant 0 : i32
    %c0_i32_1 = arith.constant 0 : i32
    return %c0_i32, %c0_i32_0 : i32, i32
  }
  func.func @transform_10(%arg0: i32) -> (i32, i32) {
    %c0_i32 = arith.constant 0 : i32
    %c0_i32_0 = arith.constant 0 : i32
    %c0_i32_1 = arith.constant 0 : i32
    return %c0_i32, %c0_i32_0 : i32, i32
  }
  func.func @transform_11(%arg0: i32) -> (i32, i32) {
    %c0_i32 = arith.constant 0 : i32
    %c0_i32_0 = arith.constant 0 : i32
    %c0_i32_1 = arith.constant 0 : i32
    return %c0_i32, %c0_i32_0 : i32, i32
  }
  func.func @transform_12(%arg0: i32) -> (i32, i32) {
    %c0_i32 = arith.constant 0 : i32
    %c0_i32_0 = arith.constant 0 : i32
    %c0_i32_1 = arith.constant 0 : i32
    return %c0_i32, %c0_i32_0 : i32, i32
  }
  func.func @transform_13(%arg0: i32) -> (i32, i32) {
    %c0_i32 = arith.constant 0 : i32
    %c0_i32_0 = arith.constant 0 : i32
    %c0_i32_1 = arith.constant 0 : i32
    return %c0_i32, %c0_i32_0 : i32, i32
  }
  func.func @transform_14(%arg0: i32) -> (i32, i32) {
    %c0_i32 = arith.constant 0 : i32
    %c0_i32_0 = arith.constant 0 : i32
    %c0_i32_1 = arith.constant 0 : i32
    return %c0_i32, %c0_i32_0 : i32, i32
  }
  func.func @transform_15(%arg0: i32) -> (i32, i32) {
    %c0_i32 = arith.constant 0 : i32
    %c0_i32_0 = arith.constant 0 : i32
    %c0_i32_1 = arith.constant 0 : i32
    return %c0_i32, %c0_i32_0 : i32, i32
  }
  func.func @transform_16(%arg0: i32) -> (i32, i32) {
    %c0_i32 = arith.constant 0 : i32
    %c0_i32_0 = arith.constant 0 : i32
    %c0_i32_1 = arith.constant 0 : i32
    return %c0_i32, %c0_i32_0 : i32, i32
  }
  func.func @transform_17(%arg0: i32) -> (i32, i32, i32) {
    %c0_i32 = arith.constant 0 : i32
    %c0_i32_0 = arith.constant 0 : i32
    %c0_i32_1 = arith.constant 0 : i32
    return %arg0, %c0_i32, %c0_i32_0 : i32, i32, i32
  }
}

</mosaic_0001>

<llo_original>
// kernel: tpu_custom_call.1
$region0: #{tpu_custom_call.1}
  #allocation0 [shape = 'u32[]', space=smem, size = 0x4, offset = 0x4, fixed_abs, tag = 'smem constant byte address 0x4 - core index']
  #allocation1 [shape = 'u32[144,128]{1,0:T(1,128)}', space=vmem, size = 0x12000, scoped, tag = 'internal scratch']
  %s0 = inlined_call_operand.hbm [shape: f32[8,128], index: 0, kind: input, shape index: {}]
  %s1 = inlined_call_operand.hbm [shape: f32[8,128], index: 1, kind: output, shape index: {}]
  %s2 = sld [smem:[#allocation0]]
  $region18: #{tpu_custom_call.1} parent=0
    _
  %s4 = ssub.s32 1, %s2
  %s5 = scalar_select 0, %s4, %s2
  $region1: #{tpu_custom_call.1} parent=0
    #allocation2 [shape = 'u8[4096]{0}', space=vmem, size = 0x1000, scoped, tag = 'input window, operand 0, single buffered']
    #allocation3 [shape = 's32[1]{0}', space=sflag, size = 0x4, scoped, tag = 'scoped memory for tpu_custom_call.1']
    #allocation4 [shape = 's32[1]{0}', space=sflag, size = 0x4, scoped, tag = 'scoped memory for tpu_custom_call.1']
    #allocation5 [shape = 'u8[4096]{0}', space=vmem, size = 0x1000, scoped, tag = 'output window, operand 0, single buffered']
    %6 = vsyncpa [#allocation3], 0
    %7 = vsyncpa [#allocation4], 0
    // Predicated region
    $region2: #{tpu_custom_call.1} parent=1 // pred_check
      _
    $region3: #{tpu_custom_call.1} parent=1 // pred_check_branch
      %9 = sbr.rel (0) target = $region5
    $region4: #{tpu_custom_call.1} parent=1 // pred_region
      %s11 = ssub.s32 128, 128
      %12 = vsyncadd [#allocation3], %s11
      %s14 = sshll.u32 [#allocation2], 4
      %s15 = int_to_ptr.vmem [resolvable:$true] %s14
      %17 = dma.hbm_to_vmem [thread:$0]  %s0, 128, %s15, [#allocation3]
    $region5: #{tpu_custom_call.1} parent=1 // pred_fallthru
      _
    // Predicated region
    $region6: #{tpu_custom_call.1} parent=1 // pred_check
      _
    $region7: #{tpu_custom_call.1} parent=1 // pred_check_branch
      %19 = sbr.rel (0) target = $region9
    $region8: #{tpu_custom_call.1} parent=1 // pred_region
      %20 = dma.done [#allocation3], 128
    $region9: #{tpu_custom_call.1} parent=1 // pred_fallthru
      _
    %v21 = vld [vmem:[#allocation2] sm:$0xff]
    %22 = vst [vmem:[#allocation5] sm:$0xff] %v21
    // Predicated region
    $region10: #{tpu_custom_call.1} parent=1 // pred_check
      _
    $region11: #{tpu_custom_call.1} parent=1 // pred_check_branch
      %24 = sbr.rel (0) target = $region13
    $region12: #{tpu_custom_call.1} parent=1 // pred_region
      %s26 = ssub.s32 128, 128
      %27 = vsyncadd [#allocation4], %s26
      %s29 = sshll.u32 [#allocation5], 4
      %s30 = int_to_ptr.vmem [resolvable:$true] %s29
      %32 = dma.vmem_to_hbm [thread:$0]  %s30, 128, %s1, [#allocation4]
    $region13: #{tpu_custom_call.1} parent=1 // pred_fallthru
      _
    // Predicated region
    $region14: #{tpu_custom_call.1} parent=1 // pred_check
      _
    $region15: #{tpu_custom_call.1} parent=1 // pred_check_branch
      %34 = sbr.rel (0) target = $region17
    $region16: #{tpu_custom_call.1} parent=1 // pred_region
      %35 = dma.done [#allocation4], 128
    $region17: #{tpu_custom_call.1} parent=1 // pred_fallthru
      _
    %36 = vsyncpa [#allocation3], 1
    %37 = vsyncpa [#allocation4], 1

// kernel: tpu_custom_call.1
$region0: #{tpu_custom_call.1}
  #allocation0 [shape = 'u32[]', space=smem, size = 0x4, offset = 0x4, fixed_abs, tag = 'smem constant byte address 0x4 - core index']
  #allocation1 [shape = 'u32[144,128]{1,0:T(1,128)}', space=vmem, size = 0x12000, scoped, tag = 'internal scratch']
  #allocation2 [shape = 'f32[8,32]{1,0:T(8,128)}', space=vmem, size = 0x1000, scoped, tag = 'scratch operand']
  %s0 = inlined_call_operand.vmem [shape: f32[2,8,32], index: 0, kind: input, shape index: {}]
  %s1 = inlined_call_operand.vmem [shape: f32[1,32], index: 1, kind: input, shape index: {}]
  %s2 = inlined_call_operand.vmem [shape: f32[1,32], index: 2, kind: input, shape index: {}]
  %s3 = inlined_call_operand.vmem [shape: bf16[32,32], index: 3, kind: input, shape index: {}]
  %s4 = inlined_call_operand.vmem [shape: f32[1,32], index: 4, kind: input, shape index: {}]
  %s5 = inlined_call_operand.vmem [shape: bf16[32,32], index: 5, kind: input, shape index: {}]
  %s6 = inlined_call_operand.vmem [shape: f32[1,32], index: 6, kind: input, shape index: {}]
  %s7 = inlined_call_operand.vmem [shape: bf16[32,32], index: 7, kind: input, shape index: {}]
  %s8 = inlined_call_operand.vmem [shape: f32[1,32], index: 8, kind: input, shape index: {}]
  %s9 = inlined_call_operand.vmem [shape: bf16[32,32], index: 9, kind: input, shape index: {}]
  %s10 = inlined_call_operand.vmem [shape: f32[1,32], index: 10, kind: input, shape index: {}]
  %s11 = inlined_call_operand.vmem [shape: f32[1,32], index: 11, kind: input, shape index: {}]
  %s12 = inlined_call_operand.vmem [shape: f32[1,32], index: 12, kind: input, shape index: {}]
  %s13 = inlined_call_operand.hbm [shape: bf16[32,128], index: 13, kind: input, shape index: {}]
  %s14 = inlined_call_operand.vmem [shape: f32[1,128], index: 14, kind: input, shape index: {}]
  %s15 = inlined_call_operand.vmem [shape: bf16[128,32], index: 15, kind: input, shape index: {}]
  %s16 = inlined_call_operand.vmem [shape: f32[1,32], index: 16, kind: input, shape index: {}]
  %s17 = inlined_call_operand.hbm [shape: f32[2,8,32], index: 17, kind: output, shape index: {}]
  %s18 = sld [smem:[#allocation0]]
  $region105: #{tpu_custom_call.1} parent=0
    _
  %s20 = ssub.s32 1, %s18
  %s21 = scalar_select 0, %s20, %s18
  $region1: #{tpu_custom_call.1} parent=0
    #allocation3 [shape = 'u8[8192]{0}', space=vmem, size = 0x2000, scoped, tag = 'input window, operand 13, single buffered']
    #allocation4 [shape = 's32[2]{0}', space=sflag, size = 0x8, scoped, tag = 'scoped memory for tpu_custom_call.1']
    #allocation5 [shape = 's32[2]{0}', space=sflag, size = 0x8, scoped, tag = 'scoped memory for tpu_custom_call.1']
    #allocation6 [shape = 'u8[8192]{0}', space=vmem, size = 0x2000, scoped, tag = 'output window, operand 0']
    %22 = vsyncpa [#allocation4], 0
    %23 = vsyncpa [#allocation5], 0
    %s24 = scalar_lea.sflag [#allocation5], 1
    %25 = vsyncpa %s24, 0
    loop: start=0, step=1, limit=4
    $region2: #{tpu_custom_call.1} parent=1 // loop_pre_header
      _
    $region3: #{tpu_custom_call.1} parent=1 // loop_header
      %s27 = sphi 0, %s31
      %p28 = scmp.ge.s32.totalorder %s27, 4
      %s37 = sphi 0, %s39
      %s40 = sphi 0, %s37
      %s41 = sphi 0, %s40
      %s57 = sphi 0, %s41
      %s61 = sphi 0, %s61
      %s63 = sphi 0, %s61
      %s64 = sphi 0, %s63
      %s78 = sphi 0, %s64
      %s82 = sphi 0, %s82
      %s84 = sphi 0, %s82
      %s85 = sphi 0, %s84
      %s99 = sphi 0, %s85
      %s103 = sphi 0, %s103
      %s105 = sphi 0, %s103
      %s106 = sphi 0, %s105
      %s120 = sphi 0, %s106
      %s124 = sphi 0, %s124
      %s126 = sphi 0, %s124
      %s127 = sphi 0, %s126
      %s141 = sphi 0, %s127
      %s145 = sphi 0, %s145
      %s147 = sphi 0, %s145
      %s148 = sphi 0, %s147
      %s162 = sphi 0, %s148
      %s166 = sphi 0, %s166
      %s168 = sphi 0, %s166
      %s169 = sphi 0, %s168
      %s183 = sphi 0, %s169
      %s187 = sphi 0, %s187
      %s189 = sphi 0, %s187
      %s190 = sphi 0, %s189
      %s204 = sphi 0, %s190
      %s208 = sphi 0, %s208
      %s210 = sphi 0, %s208
      %s211 = sphi 0, %s210
      %s225 = sphi 0, %s211
      %s229 = sphi 0, %s229
      %s231 = sphi 0, %s229
      %s232 = sphi 0, %s231
      %s246 = sphi 0, %s232
      %s250 = sphi 0, %s250
      %s252 = sphi 0, %s250
      %s253 = sphi 0, %s252
      %s267 = sphi 0, %s253
      %s271 = sphi 0, %s271
      %s273 = sphi 0, %s271
      %s274 = sphi 0, %s273
      %s288 = sphi 0, %s274
      %s292 = sphi 0, %s292
      %s294 = sphi 0, %s292
      %s295 = sphi 0, %s294
      %s309 = sphi 0, %s295
      %s313 = sphi 0, %s313
      %s315 = sphi 0, %s313
      %s316 = sphi 0, %s315
      %s330 = sphi 0, %s316
      %s334 = sphi 0, %s334
      %s336 = sphi 0, %s334
      %s337 = sphi 0, %s336
      %s351 = sphi 0, %s337
      %s355 = sphi 0, %s355
      %s357 = sphi 0, %s355
      %s358 = sphi 0, %s357
      %s372 = sphi 0, %s358
      %s376 = sphi 0, %s376
      %s378 = sphi 0, %s376
      %s379 = sphi 0, %s378
      %s393 = sphi 0, %s379
      %s399 = sphi 0, %s401
      %s402 = sphi 0, %s399
      %s403 = sphi 0, %s402
      %s419 = sphi 0, %s403
    $region4: #{tpu_custom_call.1} parent=1 // loop_header_branch
      %30 = sbr.rel (%p28) target = $region8
    $region5: #{tpu_custom_call.1} parent=1 // loop_body
      %s32 = ssub.s32 %s27, 1
      %s33 = ssub.s32 %s27, 2
      %s34 = sadd.s32 %s27, 1
      %s35 = ssub.s32 %s27, %s34
      %p36 = scmp.eq.s32.totalorder %s35, 0
      %s38 = sadd.s32 %s37, 1
      %s39 = scalar_select %p36, %s37, %s38
      %p42 = pneg %p36
      %p43 = scmp.eq.s32.totalorder %s27, 1
      %p44 = por %p42, %p43
      %p45 = scmp.ne.s32.totalorder %s37, %s40
      %p46 = scmp.eq.s32.totalorder %s27, 0
      %p47 = por %p45, %p46
      %p48 = scmp.ne.s32.totalorder %s37, %s40
      %p49 = scmp.eq.s32.totalorder %s32, 1
      %p50 = por %p48, %p49
      %p51 = scmp.ne.s32.totalorder %s40, %s41
      %p52 = scmp.eq.s32.totalorder %s32, 0
      %p53 = por %p51, %p52
      %p54 = scmp.ne.s32.totalorder %s40, %s41
      %p55 = scmp.eq.s32.totalorder %s33, 1
      %p56 = por %p54, %p55
      %p58 = scmp.ne.s32.totalorder %s41, %s57
      %p59 = scmp.eq.s32.totalorder %s33, 0
      %p60 = por %p58, %p59
      %s62 = sadd.s32 %s61, 1
      %p65 = scmp.eq.s32.totalorder %s27, 1
      %p66 = scmp.ne.s32.totalorder %s61, %s63
      %p67 = scmp.eq.s32.totalorder %s27, 0
      %p68 = por %p66, %p67
      %p69 = scmp.ne.s32.totalorder %s61, %s63
      %p70 = scmp.eq.s32.totalorder %s32, 1
      %p71 = por %p69, %p70
      %p72 = scmp.ne.s32.totalorder %s63, %s64
      %p73 = scmp.eq.s32.totalorder %s32, 0
      %p74 = por %p72, %p73
      %p75 = scmp.ne.s32.totalorder %s63, %s64
      %p76 = scmp.eq.s32.totalorder %s33, 1
      %p77 = por %p75, %p76
      %p79 = scmp.ne.s32.totalorder %s64, %s78
      %p80 = scmp.eq.s32.totalorder %s33, 0
      %p81 = por %p79, %p80
      %s83 = sadd.s32 %s82, 1
      %p86 = scmp.eq.s32.totalorder %s27, 1
      %p87 = scmp.ne.s32.totalorder %s82, %s84
      %p88 = scmp.eq.s32.totalorder %s27, 0
      %p89 = por %p87, %p88
      %p90 = scmp.ne.s32.totalorder %s82, %s84
      %p91 = scmp.eq.s32.totalorder %s32, 1
      %p92 = por %p90, %p91
      %p93 = scmp.ne.s32.totalorder %s84, %s85
      %p94 = scmp.eq.s32.totalorder %s32, 0
      %p95 = por %p93, %p94
      %p96 = scmp.ne.s32.totalorder %s84, %s85
      %p97 = scmp.eq.s32.totalorder %s33, 1
      %p98 = por %p96, %p97
      %p100 = scmp.ne.s32.totalorder %s85, %s99
      %p101 = scmp.eq.s32.totalorder %s33, 0
      %p102 = por %p100, %p101
      %s104 = sadd.s32 %s103, 1
      %p107 = scmp.eq.s32.totalorder %s27, 1
      %p108 = scmp.ne.s32.totalorder %s103, %s105
      %p109 = scmp.eq.s32.totalorder %s27, 0
      %p110 = por %p108, %p109
      %p111 = scmp.ne.s32.totalorder %s103, %s105
      %p112 = scmp.eq.s32.totalorder %s32, 1
      %p113 = por %p111, %p112
      %p114 = scmp.ne.s32.totalorder %s105, %s106
      %p115 = scmp.eq.s32.totalorder %s32, 0
      %p116 = por %p114, %p115
      %p117 = scmp.ne.s32.totalorder %s105, %s106
      %p118 = scmp.eq.s32.totalorder %s33, 1
      %p119 = por %p117, %p118
      %p121 = scmp.ne.s32.totalorder %s106, %s120
      %p122 = scmp.eq.s32.totalorder %s33, 0
      %p123 = por %p121, %p122
      %s125 = sadd.s32 %s124, 1
      %p128 = scmp.eq.s32.totalorder %s27, 1
      %p129 = scmp.ne.s32.totalorder %s124, %s126
      %p130 = scmp.eq.s32.totalorder %s27, 0
      %p131 = por %p129, %p130
      %p132 = scmp.ne.s32.totalorder %s124, %s126
      %p133 = scmp.eq.s32.totalorder %s32, 1
      %p134 = por %p132, %p133
      %p135 = scmp.ne.s32.totalorder %s126, %s127
      %p136 = scmp.eq.s32.totalorder %s32, 0
      %p137 = por %p135, %p136
      %p138 = scmp.ne.s32.totalorder %s126, %s127
      %p139 = scmp.eq.s32.totalorder %s33, 1
      %p140 = por %p138, %p139
      %p142 = scmp.ne.s32.totalorder %s127, %s141
      %p143 = scmp.eq.s32.totalorder %s33, 0
      %p144 = por %p142, %p143
      %s146 = sadd.s32 %s145, 1
      %p149 = scmp.eq.s32.totalorder %s27, 1
      %p150 = scmp.ne.s32.totalorder %s145, %s147
      %p151 = scmp.eq.s32.totalorder %s27, 0
      %p152 = por %p150, %p151
      %p153 = scmp.ne.s32.totalorder %s145, %s147
      %p154 = scmp.eq.s32.totalorder %s32, 1
      %p155 = por %p153, %p154
      %p156 = scmp.ne.s32.totalorder %s147, %s148
      %p157 = scmp.eq.s32.totalorder %s32, 0
      %p158 = por %p156, %p157
      %p159 = scmp.ne.s32.totalorder %s147, %s148
      %p160 = scmp.eq.s32.totalorder %s33, 1
      %p161 = por %p159, %p160
      %p163 = scmp.ne.s32.totalorder %s148, %s162
      %p164 = scmp.eq.s32.totalorder %s33, 0
      %p165 = por %p163, %p164
      %s167 = sadd.s32 %s166, 1
      %p170 = scmp.eq.s32.totalorder %s27, 1
      %p171 = scmp.ne.s32.totalorder %s166, %s168
      %p172 = scmp.eq.s32.totalorder %s27, 0
      %p173 = por %p171, %p172
      %p174 = scmp.ne.s32.totalorder %s166, %s168
      %p175 = scmp.eq.s32.totalorder %s32, 1
      %p176 = por %p174, %p175
      %p177 = scmp.ne.s32.totalorder %s168, %s169
      %p178 = scmp.eq.s32.totalorder %s32, 0
      %p179 = por %p177, %p178
      %p180 = scmp.ne.s32.totalorder %s168, %s169
      %p181 = scmp.eq.s32.totalorder %s33, 1
      %p182 = por %p180, %p181
      %p184 = scmp.ne.s32.totalorder %s169, %s183
      %p185 = scmp.eq.s32.totalorder %s33, 0
      %p186 = por %p184, %p185
      %s188 = sadd.s32 %s187, 1
      %p191 = scmp.eq.s32.totalorder %s27, 1
      %p192 = scmp.ne.s32.totalorder %s187, %s189
      %p193 = scmp.eq.s32.totalorder %s27, 0
      %p194 = por %p192, %p193
      %p195 = scmp.ne.s32.totalorder %s187, %s189
      %p196 = scmp.eq.s32.totalorder %s32, 1
      %p197 = por %p195, %p196
      %p198 = scmp.ne.s32.totalorder %s189, %s190
      %p199 = scmp.eq.s32.totalorder %s32, 0
      %p200 = por %p198, %p199
      %p201 = scmp.ne.s32.totalorder %s189, %s190
      %p202 = scmp.eq.s32.totalorder %s33, 1
      %p203 = por %p201, %p202
      %p205 = scmp.ne.s32.totalorder %s190, %s204
      %p206 = scmp.eq.s32.totalorder %s33, 0
      %p207 = por %p205, %p206
      %s209 = sadd.s32 %s208, 1
      %p212 = scmp.eq.s32.totalorder %s27, 1
      %p213 = scmp.ne.s32.totalorder %s208, %s210
      %p214 = scmp.eq.s32.totalorder %s27, 0
      %p215 = por %p213, %p214
      %p216 = scmp.ne.s32.totalorder %s208, %s210
      %p217 = scmp.eq.s32.totalorder %s32, 1
      %p218 = por %p216, %p217
      %p219 = scmp.ne.s32.totalorder %s210, %s211
      %p220 = scmp.eq.s32.totalorder %s32, 0
      %p221 = por %p219, %p220
      %p222 = scmp.ne.s32.totalorder %s210, %s211
      %p223 = scmp.eq.s32.totalorder %s33, 1
      %p224 = por %p222, %p223
      %p226 = scmp.ne.s32.totalorder %s211, %s225
      %p227 = scmp.eq.s32.totalorder %s33, 0
      %p228 = por %p226, %p227
      %s230 = sadd.s32 %s229, 1
      %p233 = scmp.eq.s32.totalorder %s27, 1
      %p234 = scmp.ne.s32.totalorder %s229, %s231
      %p235 = scmp.eq.s32.totalorder %s27, 0
      %p236 = por %p234, %p235
      %p237 = scmp.ne.s32.totalorder %s229, %s231
      %p238 = scmp.eq.s32.totalorder %s32, 1
      %p239 = por %p237, %p238
      %p240 = scmp.ne.s32.totalorder %s231, %s232
      %p241 = scmp.eq.s32.totalorder %s32, 0
      %p242 = por %p240, %p241
      %p243 = scmp.ne.s32.totalorder %s231, %s232
      %p244 = scmp.eq.s32.totalorder %s33, 1
      %p245 = por %p243, %p244
      %p247 = scmp.ne.s32.totalorder %s232, %s246
      %p248 = scmp.eq.s32.totalorder %s33, 0
      %p249 = por %p247, %p248
      %s251 = sadd.s32 %s250, 1
      %p254 = scmp.eq.s32.totalorder %s27, 1
      %p255 = scmp.ne.s32.totalorder %s250, %s252
      %p256 = scmp.eq.s32.totalorder %s27, 0
      %p257 = por %p255, %p256
      %p258 = scmp.ne.s32.totalorder %s250, %s252
      %p259 = scmp.eq.s32.totalorder %s32, 1
      %p260 = por %p258, %p259
      %p261 = scmp.ne.s32.totalorder %s252, %s253
      %p262 = scmp.eq.s32.totalorder %s32, 0
      %p263 = por %p261, %p262
      %p264 = scmp.ne.s32.totalorder %s252, %s253
      %p265 = scmp.eq.s32.totalorder %s33, 1
      %p266 = por %p264, %p265
      %p268 = scmp.ne.s32.totalorder %s253, %s267
      %p269 = scmp.eq.s32.totalorder %s33, 0
      %p270 = por %p268, %p269
      %s272 = sadd.s32 %s271, 1
      %p275 = scmp.eq.s32.totalorder %s27, 1
      %p276 = scmp.ne.s32.totalorder %s271, %s273
      %p277 = scmp.eq.s32.totalorder %s27, 0
      %p278 = por %p276, %p277
      %p279 = scmp.ne.s32.totalorder %s271, %s273
      %p280 = scmp.eq.s32.totalorder %s32, 1
      %p281 = por %p279, %p280
      %p282 = scmp.ne.s32.totalorder %s273, %s274
      %p283 = scmp.eq.s32.totalorder %s32, 0
      %p284 = por %p282, %p283
      %p285 = scmp.ne.s32.totalorder %s273, %s274
      %p286 = scmp.eq.s32.totalorder %s33, 1
      %p287 = por %p285, %p286
      %p289 = scmp.ne.s32.totalorder %s274, %s288
      %p290 = scmp.eq.s32.totalorder %s33, 0
      %p291 = por %p289, %p290
      %s293 = sadd.s32 %s292, 1
      %p296 = scmp.eq.s32.totalorder %s27, 1
      %p297 = scmp.ne.s32.totalorder %s292, %s294
      %p298 = scmp.eq.s32.totalorder %s27, 0
      %p299 = por %p297, %p298
      %p300 = scmp.ne.s32.totalorder %s292, %s294
      %p301 = scmp.eq.s32.totalorder %s32, 1
      %p302 = por %p300, %p301
      %p303 = scmp.ne.s32.totalorder %s294, %s295
      %p304 = scmp.eq.s32.totalorder %s32, 0
      %p305 = por %p303, %p304
      %p306 = scmp.ne.s32.totalorder %s294, %s295
      %p307 = scmp.eq.s32.totalorder %s33, 1
      %p308 = por %p306, %p307
      %p310 = scmp.ne.s32.totalorder %s295, %s309
      %p311 = scmp.eq.s32.totalorder %s33, 0
      %p312 = por %p310, %p311
      %s314 = sadd.s32 %s313, 1
      %p317 = scmp.eq.s32.totalorder %s27, 1
      %p318 = scmp.ne.s32.totalorder %s313, %s315
      %p319 = scmp.eq.s32.totalorder %s27, 0
      %p320 = por %p318, %p319
      %p321 = scmp.ne.s32.totalorder %s313, %s315
      %p322 = scmp.eq.s32.totalorder %s32, 1
      %p323 = por %p321, %p322
      %p324 = scmp.ne.s32.totalorder %s315, %s316
      %p325 = scmp.eq.s32.totalorder %s32, 0
      %p326 = por %p324, %p325
      %p327 = scmp.ne.s32.totalorder %s315, %s316
      %p328 = scmp.eq.s32.totalorder %s33, 1
      %p329 = por %p327, %p328
      %p331 = scmp.ne.s32.totalorder %s316, %s330
      %p332 = scmp.eq.s32.totalorder %s33, 0
      %p333 = por %p331, %p332
      %s335 = sadd.s32 %s334, 1
      %p338 = scmp.eq.s32.totalorder %s27, 1
      %p339 = scmp.ne.s32.totalorder %s334, %s336
      %p340 = scmp.eq.s32.totalorder %s27, 0
      %p341 = por %p339, %p340
      %p342 = scmp.ne.s32.totalorder %s334, %s336
      %p343 = scmp.eq.s32.totalorder %s32, 1
      %p344 = por %p342, %p343
      %p345 = scmp.ne.s32.totalorder %s336, %s337
      %p346 = scmp.eq.s32.totalorder %s32, 0
      %p347 = por %p345, %p346
      %p348 = scmp.ne.s32.totalorder %s336, %s337
      %p349 = scmp.eq.s32.totalorder %s33, 1
      %p350 = por %p348, %p349
      %p352 = scmp.ne.s32.totalorder %s337, %s351
      %p353 = scmp.eq.s32.totalorder %s33, 0
      %p354 = por %p352, %p353
      %s356 = sadd.s32 %s355, 1
      %p359 = scmp.eq.s32.totalorder %s27, 1
      %p360 = scmp.ne.s32.totalorder %s355, %s357
      %p361 = scmp.eq.s32.totalorder %s27, 0
      %p362 = por %p360, %p361
      %p363 = scmp.ne.s32.totalorder %s355, %s357
      %p364 = scmp.eq.s32.totalorder %s32, 1
      %p365 = por %p363, %p364
      %p366 = scmp.ne.s32.totalorder %s357, %s358
      %p367 = scmp.eq.s32.totalorder %s32, 0
      %p368 = por %p366, %p367
      %p369 = scmp.ne.s32.totalorder %s357, %s358
      %p370 = scmp.eq.s32.totalorder %s33, 1
      %p371 = por %p369, %p370
      %p373 = scmp.ne.s32.totalorder %s358, %s372
      %p374 = scmp.eq.s32.totalorder %s33, 0
      %p375 = por %p373, %p374
      %s377 = sadd.s32 %s376, 1
      %p380 = scmp.eq.s32.totalorder %s27, 1
      %p381 = scmp.ne.s32.totalorder %s376, %s378
      %p382 = scmp.eq.s32.totalorder %s27, 0
      %p383 = por %p381, %p382
      %p384 = scmp.ne.s32.totalorder %s376, %s378
      %p385 = scmp.eq.s32.totalorder %s32, 1
      %p386 = por %p384, %p385
      %p387 = scmp.ne.s32.totalorder %s378, %s379
      %p388 = scmp.eq.s32.totalorder %s32, 0
      %p389 = por %p387, %p388
      %p390 = scmp.ne.s32.totalorder %s378, %s379
      %p391 = scmp.eq.s32.totalorder %s33, 1
      %p392 = por %p390, %p391
      %p394 = scmp.ne.s32.totalorder %s379, %s393
      %p395 = scmp.eq.s32.totalorder %s33, 0
      %p396 = por %p394, %p395
      %s397 = ssub.s32 %s27, %s34
      %p398 = scmp.eq.s32.totalorder %s397, 0
      %s400 = sadd.s32 %s399, 1
      %s401 = scalar_select %p398, %s399, %s400
      %p404 = pneg %p398
      %p405 = scmp.eq.s32.totalorder %s27, 1
      %p406 = por %p404, %p405
      %p407 = scmp.ne.s32.totalorder %s399, %s402
      %p408 = scmp.eq.s32.totalorder %s27, 0
      %p409 = por %p407, %p408
      %p410 = scmp.ne.s32.totalorder %s399, %s402
      %p411 = scmp.eq.s32.totalorder %s32, 1
      %p412 = por %p410, %p411
      %p413 = scmp.ne.s32.totalorder %s402, %s403
      %p414 = scmp.eq.s32.totalorder %s32, 0
      %p415 = por %p413, %p414
      %p416 = scmp.ne.s32.totalorder %s402, %s403
      %p417 = scmp.eq.s32.totalorder %s33, 1
      %p418 = por %p416, %p417
      %p420 = scmp.ne.s32.totalorder %s403, %s419
      %p421 = scmp.eq.s32.totalorder %s33, 0
      %p422 = por %p420, %p421
      %p423 = scmp.le.s32.totalorder 1, %s27
      %p424 = scmp.lt.s32.totalorder %s27, 3
      %p425 = pnand %p423, %p424
      %p426 = pneg %p425
      // Predicated region
      $region9: #{tpu_custom_call.1} parent=5 // pred_check
        _
      $region10: #{tpu_custom_call.1} parent=5 // pred_check_branch
        %428 = sbr.rel (%p425) target = $region12
      $region11: #{tpu_custom_call.1} parent=5 // pred_region
        %s429 = ssub.s32 %s27, 1
        // Predicated region
        $region13: #{tpu_custom_call.1} parent=11 // pred_check
          %p430 = pneg %p74
        $region14: #{tpu_custom_call.1} parent=11 // pred_check_branch
          %432 = sbr.rel (%p430) target = $region16
        $region15: #{tpu_custom_call.1} parent=11 // pred_region
          _
        $region16: #{tpu_custom_call.1} parent=11 // pred_fallthru
          _
        // Predicated region
        $region17: #{tpu_custom_call.1} parent=11 // pred_check
          %p433 = pneg %p95
        $region18: #{tpu_custom_call.1} parent=11 // pred_check_branch
          %435 = sbr.rel (%p433) target = $region20
        $region19: #{tpu_custom_call.1} parent=11 // pred_region
          _
        $region20: #{tpu_custom_call.1} parent=11 // pred_fallthru
          _
        // Predicated region
        $region21: #{tpu_custom_call.1} parent=11 // pred_check
          %p436 = pneg %p116
        $region22: #{tpu_custom_call.1} parent=11 // pred_check_branch
          %438 = sbr.rel (%p436) target = $region24
        $region23: #{tpu_custom_call.1} parent=11 // pred_region
          _
        $region24: #{tpu_custom_call.1} parent=11 // pred_fallthru
          _
        // Predicated region
        $region25: #{tpu_custom_call.1} parent=11 // pred_check
          %p439 = pneg %p137
        $region26: #{tpu_custom_call.1} parent=11 // pred_check_branch
          %441 = sbr.rel (%p439) target = $region28
        $region27: #{tpu_custom_call.1} parent=11 // pred_region
          _
        $region28: #{tpu_custom_call.1} parent=11 // pred_fallthru
          _
        // Predicated region
        $region29: #{tpu_custom_call.1} parent=11 // pred_check
          %p442 = pneg %p158
        $region30: #{tpu_custom_call.1} parent=11 // pred_check_branch
          %444 = sbr.rel (%p442) target = $region32
        $region31: #{tpu_custom_call.1} parent=11 // pred_region
          _
        $region32: #{tpu_custom_call.1} parent=11 // pred_fallthru
          _
        // Predicated region
        $region33: #{tpu_custom_call.1} parent=11 // pred_check
          %p445 = pneg %p179
        $region34: #{tpu_custom_call.1} parent=11 // pred_check_branch
          %447 = sbr.rel (%p445) target = $region36
        $region35: #{tpu_custom_call.1} parent=11 // pred_region
          _
        $region36: #{tpu_custom_call.1} parent=11 // pred_fallthru
          _
        // Predicated region
        $region37: #{tpu_custom_call.1} parent=11 // pred_check
          %p448 = pneg %p200
        $region38: #{tpu_custom_call.1} parent=11 // pred_check_branch
          %450 = sbr.rel (%p448) target = $region40
        $region39: #{tpu_custom_call.1} parent=11 // pred_region
          _
        $region40: #{tpu_custom_call.1} parent=11 // pred_fallthru
          _
        // Predicated region
        $region41: #{tpu_custom_call.1} parent=11 // pred_check
          %p451 = pneg %p221
        $region42: #{tpu_custom_call.1} parent=11 // pred_check_branch
          %453 = sbr.rel (%p451) target = $region44
        $region43: #{tpu_custom_call.1} parent=11 // pred_region
          _
        $region44: #{tpu_custom_call.1} parent=11 // pred_fallthru
          _
        // Predicated region
        $region45: #{tpu_custom_call.1} parent=11 // pred_check
          %p454 = pneg %p242
        $region46: #{tpu_custom_call.1} parent=11 // pred_check_branch
          %456 = sbr.rel (%p454) target = $region48
        $region47: #{tpu_custom_call.1} parent=11 // pred_region
          _
        $region48: #{tpu_custom_call.1} parent=11 // pred_fallthru
          _
        // Predicated region
        $region49: #{tpu_custom_call.1} parent=11 // pred_check
          %p457 = pneg %p263
        $region50: #{tpu_custom_call.1} parent=11 // pred_check_branch
          %459 = sbr.rel (%p457) target = $region52
        $region51: #{tpu_custom_call.1} parent=11 // pred_region
          _
        $region52: #{tpu_custom_call.1} parent=11 // pred_fallthru
          _
        // Predicated region
        $region53: #{tpu_custom_call.1} parent=11 // pred_check
          %p460 = pneg %p284
        $region54: #{tpu_custom_call.1} parent=11 // pred_check_branch
          %462 = sbr.rel (%p460) target = $region56
        $region55: #{tpu_custom_call.1} parent=11 // pred_region
          _
        $region56: #{tpu_custom_call.1} parent=11 // pred_fallthru
          _
        // Predicated region
        $region57: #{tpu_custom_call.1} parent=11 // pred_check
          %p463 = pneg %p305
        $region58: #{tpu_custom_call.1} parent=11 // pred_check_branch
          %465 = sbr.rel (%p463) target = $region60
        $region59: #{tpu_custom_call.1} parent=11 // pred_region
          _
        $region60: #{tpu_custom_call.1} parent=11 // pred_fallthru
          _
        // Predicated region
        $region61: #{tpu_custom_call.1} parent=11 // pred_check
          %p466 = pneg %p326
        $region62: #{tpu_custom_call.1} parent=11 // pred_check_branch
          %468 = sbr.rel (%p466) target = $region64
        $region63: #{tpu_custom_call.1} parent=11 // pred_region
          %s470 = ssub.s32 256, 256
          %471 = vsyncadd [#allocation4], %s470
          %s472 = sshll.u32 [#allocation3], 4
          %s473 = int_to_ptr.vmem [resolvable:$true] %s472
          %478 = dma.hbm_to_vmem [thread:$0]  %s13, 256, %s473, [#allocation4], 64, 64, 4
        $region64: #{tpu_custom_call.1} parent=11 // pred_fallthru
          _
        // Predicated region
        $region65: #{tpu_custom_call.1} parent=11 // pred_check
          %p479 = pneg %p347
        $region66: #{tpu_custom_call.1} parent=11 // pred_check_branch
          %481 = sbr.rel (%p479) target = $region68
        $region67: #{tpu_custom_call.1} parent=11 // pred_region
          _
        $region68: #{tpu_custom_call.1} parent=11 // pred_fallthru
          _
        // Predicated region
        $region69: #{tpu_custom_call.1} parent=11 // pred_check
          %p482 = pneg %p368
        $region70: #{tpu_custom_call.1} parent=11 // pred_check_branch
          %484 = sbr.rel (%p482) target = $region72
        $region71: #{tpu_custom_call.1} parent=11 // pred_region
          _
        $region72: #{tpu_custom_call.1} parent=11 // pred_fallthru
          _
        // Predicated region
        $region73: #{tpu_custom_call.1} parent=11 // pred_check
          %p485 = pneg %p389
        $region74: #{tpu_custom_call.1} parent=11 // pred_check_branch
          %487 = sbr.rel (%p485) target = $region76
        $region75: #{tpu_custom_call.1} parent=11 // pred_region
          _
        $region76: #{tpu_custom_call.1} parent=11 // pred_fallthru
          _
      $region12: #{tpu_custom_call.1} parent=5 // pred_fallthru
        _
      %p488 = scmp.lt.s32.totalorder %s27, 2
      // Predicated region
      $region77: #{tpu_custom_call.1} parent=5 // pred_check
        %p489 = pneg %p488
      $region78: #{tpu_custom_call.1} parent=5 // pred_check_branch
        %491 = sbr.rel (%p489) target = $region80
      $region79: #{tpu_custom_call.1} parent=5 // pred_region
        // Predicated region
        $region81: #{tpu_custom_call.1} parent=79 // pred_check
          %p492 = pneg %p47
        $region82: #{tpu_custom_call.1} parent=79 // pred_check_branch
          %494 = sbr.rel (%p492) target = $region84
        $region83: #{tpu_custom_call.1} parent=79 // pred_region
          %p495 = scmp.lt.s32.totalorder %s27, 1
          %s496 = scalar_select %p495, %s27, 1
          %s497 = smul.addr %s496, 8
          %s498 = scalar_lea.vmem %s0, %s497
        $region84: #{tpu_custom_call.1} parent=79 // pred_fallthru
          _
      $region80: #{tpu_custom_call.1} parent=5 // pred_fallthru
        _
      %p499 = scmp.le.s32.totalorder 1, %s27
      %p500 = scmp.lt.s32.totalorder %s27, 3
      %p501 = pnand %p499, %p500
      %p502 = pneg %p501
      // Predicated region
      $region85: #{tpu_custom_call.1} parent=5 // pred_check
        _
      $region86: #{tpu_custom_call.1} parent=5 // pred_check_branch
        %504 = sbr.rel (%p501) target = $region88
      $region87: #{tpu_custom_call.1} parent=5 // pred_region
        %s505 = ssub.s32 %s27, 1
        // Predicated region
        $region89: #{tpu_custom_call.1} parent=87 // pred_check
          %p506 = pneg %p326
        $region90: #{tpu_custom_call.1} parent=87 // pred_check_branch
          %508 = sbr.rel (%p506) target = $region92
        $region91: #{tpu_custom_call.1} parent=87 // pred_region
          %509 = dma.done [#allocation4], 256
        $region92: #{tpu_custom_call.1} parent=87 // pred_fallthru
          _
        %p510 = scmp.lt.s32.totalorder %s32, 1
        %s511 = scalar_select %p510, %s32, 1
        %s512 = smul.addr %s511, 8
        %s513 = scalar_lea.vmem %s0, %s512
        %p514 = pneg %p53
        %p515 = pneg %p50
        %p516 = pneg %p74
        %p517 = pneg %p71
        %p518 = pneg %p95
        %p519 = pneg %p92
        %p520 = pneg %p116
        %p521 = pneg %p113
        %p522 = pneg %p137
        %p523 = pneg %p134
        %p524 = pneg %p158
        %p525 = pneg %p155
        %p526 = pneg %p179
        %p527 = pneg %p176
        %p528 = pneg %p200
        %p529 = pneg %p197
        %p530 = pneg %p221
        %p531 = pneg %p218
        %p532 = pneg %p242
        %p533 = pneg %p239
        %p534 = pneg %p263
        %p535 = pneg %p260
        %p536 = pneg %p284
        %p537 = pneg %p281
        %p538 = pneg %p305
        %p539 = pneg %p302
        %p540 = pneg %p326
        %p541 = pneg %p323
        %p542 = pneg %p347
        %p543 = pneg %p344
        %p544 = pneg %p368
        %p545 = pneg %p365
        %p546 = pneg %p389
        %p547 = pneg %p386
        %p548 = pneg %p415
        %p549 = pneg %p412
        %s550 = sand.u32 %s402, 1
        %s551 = scalar_lea.sflag [#allocation5], %s550
        %s552 = sand.u32 %s402, 1
        %s553 = smul.addr %s552, 8
        %s554 = scalar_lea.vmem [#allocation6], %s553
        %p555 = scmp.lt.s32.totalorder %s32, 1
        %s556 = scalar_select %p555, %s32, 1
        %s557 = smul.addr %s556, 8
        %s558 = scalar_lea.vmem %s0, %s557
        %v560 = vld [vmem:[%s558] sm:$0xff]
        %v561 = vld [vmem:[%s1] sm:$0x1]
        %v562 = vld [vmem:[%s2] sm:$0x1]
        %vm563 = vcmask 261120
        %v564 = vsel %vm563, %v560, 0.0
        %565 = vadd.xlane.f32.xlu0 %v564
        %v566 = vpop.xlane.xlu0 %565
        %v567 = vrcp.pop 32.0
        %v568 = vmul.f32 %v566, %v567
        %v569 = vsub.f32 %v560, %v568
        %v570 = vmul.f32 %v569, %v569
        %v571 = vsel %vm563, %v570, 0.0
        %572 = vadd.xlane.f32.xlu0 %v571
        %v573 = vpop.xlane.xlu0 %572
        %v574 = vmul.f32 %v573, %v567
        %v575 = vadd.f32 %v574, 1e-05
        %v576 = vrsqrt.pop %v575
        %v577 = vmul.f32 %v569, %v576
        %v579 = vlaneseq
        %v580 = vshrl.u32 %v579, 7
        %v581 = vsub.s32 0, %v580
        %v582 = vrot.slane %v561, %v581
        %v584 = vmul.f32 %v577, %v582
        %v586 = vlaneseq
        %v587 = vshrl.u32 %v586, 7
        %v588 = vsub.s32 0, %v587
        %v589 = vrot.slane %v562, %v588
        %v591 = vadd.f32 %v584, %v589
        %v592 = vpack.c.bf16 %v591, %v591
        %v593 = vld [vmem:[%s3] sm:$0xf]
        %v594 = vld [vmem:[%s3 + $0x4] sm:$0xf]
        %v595 = vld [vmem:[%s3 + $0x8] sm:$0xf]
        %v596 = vld [vmem:[%s3 + $0xc] sm:$0xf]
        %v597 = vld [vmem:[%s4] sm:$0x1]
        %v599 = vlaneseq
        %v600 = vshrl.u32 %v599, 7
        %v601 = vsub.s32 0, %v600
        %v602 = vrot.slane %v597, %v601
        %v608 = vunpack.c.l.b16 %v593
        %v609 = vunpack.c.l.b16 %v594
        %v610 = vunpack.c.l.b16 %v595
        %v611 = vunpack.c.l.b16 %v596
        %v612 = vpack.c.b16 %v609, %v608
        %v613 = vpack.c.b16 %v611, %v610
        %v617 = vsel %vm563, %v592, 0
        %619 = vmatprep.subr.bf16.mxu0 0
        %620 = vmatpush1.bf16.msra.mxu0 0
        %621 = vmatprep.subr.bf16.mxu0 0
        %622 = vmatpush1.bf16.msra.mxu0 0
        %623 = vmatprep.subr.bf16.mxu0 0
        %624 = vmatpush1.bf16.msra.mxu0 0
        %625 = vmatprep.subr.bf16.mxu0 0
        %626 = vmatpush1.bf16.msra.mxu0 0
        %627 = vmatprep.subr.bf16.mxu0 0
        %628 = vmatpush1.bf16.msra.mxu0 0
        %629 = vmatprep.subr.bf16.mxu0 0
        %630 = vmatpush1.bf16.msra.mxu0 0
        %631 = vmatprep.subr.bf16.mxu0 0
        %632 = vmatpush1.bf16.msra.mxu0 %v613
        %633 = vmatprep.subr.bf16.mxu0 0
        %634 = vmatpush1.bf16.msra.mxu0 %v612
        %635 = vmatprep.subr.bf16.mxu0 0
        %636 = vmatpush2.bf16.msra.mxu0 0
        %637 = vmatprep.subr.bf16.mxu0 0
        %638 = vmatpush2.bf16.msra.mxu0 0
        %639 = vmatprep.subr.bf16.mxu0 0
        %640 = vmatpush2.bf16.msra.mxu0 0
        %641 = vmatprep.subr.bf16.mxu0 0
        %642 = vmatpush2.bf16.msra.mxu0 0
        %643 = vmatprep.subr.bf16.mxu0 0
        %644 = vmatpush2.bf16.msra.mxu0 0
        %645 = vmatprep.subr.bf16.mxu0 0
        %646 = vmatpush2.bf16.msra.mxu0 0
        %647 = vmatprep.subr.bf16.mxu0 0
        %648 = vmatpush2.bf16.msra.mxu0 0
        %649 = vmatprep.subr.bf16.mxu0 0
        %650 = vmatpush2.bf16.msra.mxu0 0
        %651 = vmatprep.mubr.bf16.mxu0 0
        %652 = vmatmul.mubr.bf16.gmra.mxu0 %v617
        %v653 = vpop.f32.mrf.mxu0
        %v654 = vadd.f32 %v602, %v653
        %v655 = vpop.f32.mrf.mxu0
        %v656 = vpop.f32.mrf.mxu0
        %v657 = vpop.f32.mrf.mxu0
        %658 = vdwg.mxu0
        %v659 = vld [vmem:[%s5] sm:$0xf]
        %v660 = vld [vmem:[%s5 + $0x4] sm:$0xf]
        %v661 = vld [vmem:[%s5 + $0x8] sm:$0xf]
        %v662 = vld [vmem:[%s5 + $0xc] sm:$0xf]
        %v663 = vld [vmem:[%s6] sm:$0x1]
        %v665 = vlaneseq
        %v666 = vshrl.u32 %v665, 7
        %v667 = vsub.s32 0, %v666
        %v668 = vrot.slane %v663, %v667
        %v674 = vunpack.c.l.b16 %v659
        %v675 = vunpack.c.l.b16 %v660
        %v676 = vunpack.c.l.b16 %v661
        %v677 = vunpack.c.l.b16 %v662
        %v678 = vpack.c.b16 %v675, %v674
        %v679 = vpack.c.b16 %v677, %v676
        %682 = vmatprep.subr.bf16.mxu0 0
        %683 = vmatpush1.bf16.msra.mxu0 0
        %684 = vmatprep.subr.bf16.mxu0 0
        %685 = vmatpush1.bf16.msra.mxu0 0
        %686 = vmatprep.subr.bf16.mxu0 0
        %687 = vmatpush1.bf16.msra.mxu0 0
        %688 = vmatprep.subr.bf16.mxu0 0
        %689 = vmatpush1.bf16.msra.mxu0 0
        %690 = vmatprep.subr.bf16.mxu0 0
        %691 = vmatpush1.bf16.msra.mxu0 0
        %692 = vmatprep.subr.bf16.mxu0 0
        %693 = vmatpush1.bf16.msra.mxu0 0
        %694 = vmatprep.subr.bf16.mxu0 0
        %695 = vmatpush1.bf16.msra.mxu0 %v679
        %696 = vmatprep.subr.bf16.mxu0 0
        %697 = vmatpush1.bf16.msra.mxu0 %v678
        %698 = vmatprep.subr.bf16.mxu0 0
        %699 = vmatpush2.bf16.msra.mxu0 0
        %700 = vmatprep.subr.bf16.mxu0 0
        %701 = vmatpush2.bf16.msra.mxu0 0
        %702 = vmatprep.subr.bf16.mxu0 0
        %703 = vmatpush2.bf16.msra.mxu0 0
        %704 = vmatprep.subr.bf16.mxu0 0
        %705 = vmatpush2.bf16.msra.mxu0 0
        %706 = vmatprep.subr.bf16.mxu0 0
        %707 = vmatpush2.bf16.msra.mxu0 0
        %708 = vmatprep.subr.bf16.mxu0 0
        %709 = vmatpush2.bf16.msra.mxu0 0
        %710 = vmatprep.subr.bf16.mxu0 0
        %711 = vmatpush2.bf16.msra.mxu0 0
        %712 = vmatprep.subr.bf16.mxu0 0
        %713 = vmatpush2.bf16.msra.mxu0 0
        %714 = vmatprep.mubr.bf16.mxu0 0
        %715 = vmatmul.mubr.bf16.gmra.mxu0 %v617
        %v716 = vpop.f32.mrf.mxu0
        %v717 = vadd.f32 %v668, %v716
        %v718 = vpop.f32.mrf.mxu0
        %v719 = vpop.f32.mrf.mxu0
        %v720 = vpop.f32.mrf.mxu0
        %721 = vdwg.mxu0
        %v722 = vld [vmem:[%s7] sm:$0xf]
        %v723 = vld [vmem:[%s7 + $0x4] sm:$0xf]
        %v724 = vld [vmem:[%s7 + $0x8] sm:$0xf]
        %v725 = vld [vmem:[%s7 + $0xc] sm:$0xf]
        %v726 = vld [vmem:[%s8] sm:$0x1]
        %v728 = vlaneseq
        %v729 = vshrl.u32 %v728, 7
        %v730 = vsub.s32 0, %v729
        %v731 = vrot.slane %v726, %v730
        %v737 = vunpack.c.l.b16 %v722
        %v738 = vunpack.c.l.b16 %v723
        %v739 = vunpack.c.l.b16 %v724
        %v740 = vunpack.c.l.b16 %v725
        %v741 = vpack.c.b16 %v738, %v737
        %v742 = vpack.c.b16 %v740, %v739
        %745 = vmatprep.subr.bf16.mxu0 0
        %746 = vmatpush1.bf16.msra.mxu0 0
        %747 = vmatprep.subr.bf16.mxu0 0
        %748 = vmatpush1.bf16.msra.mxu0 0
        %749 = vmatprep.subr.bf16.mxu0 0
        %750 = vmatpush1.bf16.msra.mxu0 0
        %751 = vmatprep.subr.bf16.mxu0 0
        %752 = vmatpush1.bf16.msra.mxu0 0
        %753 = vmatprep.subr.bf16.mxu0 0
        %754 = vmatpush1.bf16.msra.mxu0 0
        %755 = vmatprep.subr.bf16.mxu0 0
        %756 = vmatpush1.bf16.msra.mxu0 0
        %757 = vmatprep.subr.bf16.mxu0 0
        %758 = vmatpush1.bf16.msra.mxu0 %v742
        %759 = vmatprep.subr.bf16.mxu0 0
        %760 = vmatpush1.bf16.msra.mxu0 %v741
        %761 = vmatprep.subr.bf16.mxu0 0
        %762 = vmatpush2.bf16.msra.mxu0 0
        %763 = vmatprep.subr.bf16.mxu0 0
        %764 = vmatpush2.bf16.msra.mxu0 0
        %765 = vmatprep.subr.bf16.mxu0 0
        %766 = vmatpush2.bf16.msra.mxu0 0
        %767 = vmatprep.subr.bf16.mxu0 0
        %768 = vmatpush2.bf16.msra.mxu0 0
        %769 = vmatprep.subr.bf16.mxu0 0
        %770 = vmatpush2.bf16.msra.mxu0 0
        %771 = vmatprep.subr.bf16.mxu0 0
        %772 = vmatpush2.bf16.msra.mxu0 0
        %773 = vmatprep.subr.bf16.mxu0 0
        %774 = vmatpush2.bf16.msra.mxu0 0
        %775 = vmatprep.subr.bf16.mxu0 0
        %776 = vmatpush2.bf16.msra.mxu0 0
        %777 = vmatprep.mubr.bf16.mxu0 0
        %778 = vmatmul.mubr.bf16.gmra.mxu0 %v617
        %v779 = vpop.f32.mrf.mxu0
        %v780 = vadd.f32 %v731, %v779
        %v781 = vpop.f32.mrf.mxu0
        %v782 = vpop.f32.mrf.mxu0
        %v783 = vpop.f32.mrf.mxu0
        %784 = vdwg.mxu0
        %v785 = vlaneseq
        %v786 = vshrl.u32 %v785, 7
        %v787 = vlaneseq
        %v788 = vand.u32 %v787, 127
        %vm789 = vcmp.ge.s32.totalorder %v786, %v788
        %v790 = vpack.c.bf16 %v654, %v654
        %v791 = vpack.c.bf16 %v717, %v717
        %v792 = vpack.c.bf16 %v780, %v780
        %vm793 = vcmask 64512
        %v795 = vsel %vm793, %v790, 0
        %v798 = vsel %vm793, %v791, 0
        %800 = vmatprep.subr.bf16.mxu0 0
        %801 = vmatpush1.bf16.xpose.msra.mxu0 0
        %802 = vmatprep.subr.bf16.mxu0 0
        %803 = vmatpush1.bf16.xpose.msra.mxu0 0
        %804 = vmatprep.subr.bf16.mxu0 0
        %805 = vmatpush1.bf16.xpose.msra.mxu0 0
        %806 = vmatprep.subr.bf16.mxu0 0
        %807 = vmatpush1.bf16.xpose.msra.mxu0 0
        %808 = vmatprep.subr.bf16.mxu0 0
        %809 = vmatpush1.bf16.xpose.msra.mxu0 0
        %810 = vmatprep.subr.bf16.mxu0 0
        %811 = vmatpush1.bf16.xpose.msra.mxu0 0
        %812 = vmatprep.subr.bf16.mxu0 0
        %813 = vmatpush1.bf16.xpose.msra.mxu0 0
        %814 = vmatprep.subr.bf16.mxu0 0
        %815 = vmatpush1.bf16.xpose.msra.mxu0 %v798
        %816 = vmatprep.subr.bf16.mxu0 0
        %817 = vmatpush2.bf16.xpose.msra.mxu0 0
        %818 = vmatprep.subr.bf16.mxu0 0
        %819 = vmatpush2.bf16.xpose.msra.mxu0 0
        %820 = vmatprep.subr.bf16.mxu0 0
        %821 = vmatpush2.bf16.xpose.msra.mxu0 0
        %822 = vmatprep.subr.bf16.mxu0 0
        %823 = vmatpush2.bf16.xpose.msra.mxu0 0
        %824 = vmatprep.subr.bf16.mxu0 0
        %825 = vmatpush2.bf16.xpose.msra.mxu0 0
        %826 = vmatprep.subr.bf16.mxu0 0
        %827 = vmatpush2.bf16.xpose.msra.mxu0 0
        %828 = vmatprep.subr.bf16.mxu0 0
        %829 = vmatpush2.bf16.xpose.msra.mxu0 0
        %830 = vmatprep.subr.bf16.mxu0 0
        %831 = vmatpush2.bf16.xpose.msra.mxu0 0
        %832 = vmatprep.mubr.bf16.mxu0 0
        %833 = vmatmul.mubr.bf16.gmra.mxu0 %v795
        %v834 = vpop.f32.mrf.mxu0
        %v835 = vadd.f32 0.0, %v834
        %v836 = vpop.f32.mrf.mxu0
        %v837 = vpop.f32.mrf.mxu0
        %v838 = vpop.f32.mrf.mxu0
        %839 = vdwg.mxu0
        %v840 = vsel %vm789, %v835, -1e+30
        %v841 = vsel %vm793, %v840, -inf
        %842 = vmax.xlane.f32.xlu0 %v841
        %v843 = vpop.xlane.xlu0 %842
        %v844 = vsub.f32 %v840, %v843
        %v845 = vmul.f32 %v844, 1.442695
        %v846 = vpow.pop %v845
        %v847 = vsel %vm793, %v846, 0.0
        %848 = vadd.xlane.f32.xlu0 %v847
        %v849 = vpop.xlane.xlu0 %848
        %v850 = vpack.c.bf16 %v846, %v846
        %v852 = vsel %vm793, %v850, 0
        %vm854 = vcmask 1043456
        %v856 = vsel %vm854, %v792, 0
        %858 = vmatprep.subr.bf16.mxu0 0
        %859 = vmatpush1.bf16.msra.mxu0 0
        %860 = vmatprep.subr.bf16.mxu0 0
        %861 = vmatpush1.bf16.msra.mxu0 0
        %862 = vmatprep.subr.bf16.mxu0 0
        %863 = vmatpush1.bf16.msra.mxu0 0
        %864 = vmatprep.subr.bf16.mxu0 0
        %865 = vmatpush1.bf16.msra.mxu0 0
        %866 = vmatprep.subr.bf16.mxu0 0
        %867 = vmatpush1.bf16.msra.mxu0 0
        %868 = vmatprep.subr.bf16.mxu0 0
        %869 = vmatpush1.bf16.msra.mxu0 0
        %870 = vmatprep.subr.bf16.mxu0 0
        %871 = vmatpush1.bf16.msra.mxu0 0
        %872 = vmatprep.subr.bf16.mxu0 0
        %873 = vmatpush1.bf16.msra.mxu0 %v856
        %874 = vmatprep.subr.bf16.mxu0 0
        %875 = vmatpush2.bf16.msra.mxu0 0
        %876 = vmatprep.subr.bf16.mxu0 0
        %877 = vmatpush2.bf16.msra.mxu0 0
        %878 = vmatprep.subr.bf16.mxu0 0
        %879 = vmatpush2.bf16.msra.mxu0 0
        %880 = vmatprep.subr.bf16.mxu0 0
        %881 = vmatpush2.bf16.msra.mxu0 0
        %882 = vmatprep.subr.bf16.mxu0 0
        %883 = vmatpush2.bf16.msra.mxu0 0
        %884 = vmatprep.subr.bf16.mxu0 0
        %885 = vmatpush2.bf16.msra.mxu0 0
        %886 = vmatprep.subr.bf16.mxu0 0
        %887 = vmatpush2.bf16.msra.mxu0 0
        %888 = vmatprep.subr.bf16.mxu0 0
        %889 = vmatpush2.bf16.msra.mxu0 0
        %890 = vmatprep.mubr.bf16.mxu0 0
        %891 = vmatmul.mubr.bf16.gmra.mxu0 %v852
        %v892 = vpop.f32.mrf.mxu0
        %v893 = vadd.f32 0.0, %v892
        %v894 = vpop.f32.mrf.mxu0
        %v895 = vpop.f32.mrf.mxu0
        %v896 = vpop.f32.mrf.mxu0
        %897 = vdwg.mxu0
        %v898 = vrcp.pop %v849
        %v899 = vmul.f32 %v893, %v898
        %900 = vst.msk [vmem:[#allocation2] sm:$0xff] %vm793, %v899
        %902 = vrot.lane.b32.xlu0 %v790, 120
        %v903 = vpop.permute.xlu0 %902
        %905 = vrot.lane.b32.xlu0 %v791, 120
        %v906 = vpop.permute.xlu0 %905
        %v908 = vsel %vm793, %v903, 0
        %v911 = vsel %vm793, %v906, 0
        %913 = vmatprep.subr.bf16.mxu0 0
        %914 = vmatpush1.bf16.xpose.msra.mxu0 0
        %915 = vmatprep.subr.bf16.mxu0 0
        %916 = vmatpush1.bf16.xpose.msra.mxu0 0
        %917 = vmatprep.subr.bf16.mxu0 0
        %918 = vmatpush1.bf16.xpose.msra.mxu0 0
        %919 = vmatprep.subr.bf16.mxu0 0
        %920 = vmatpush1.bf16.xpose.msra.mxu0 0
        %921 = vmatprep.subr.bf16.mxu0 0
        %922 = vmatpush1.bf16.xpose.msra.mxu0 0
        %923 = vmatprep.subr.bf16.mxu0 0
        %924 = vmatpush1.bf16.xpose.msra.mxu0 0
        %925 = vmatprep.subr.bf16.mxu0 0
        %926 = vmatpush1.bf16.xpose.msra.mxu0 0
        %927 = vmatprep.subr.bf16.mxu0 0
        %928 = vmatpush1.bf16.xpose.msra.mxu0 %v911
        %929 = vmatprep.subr.bf16.mxu0 0
        %930 = vmatpush2.bf16.xpose.msra.mxu0 0
        %931 = vmatprep.subr.bf16.mxu0 0
        %932 = vmatpush2.bf16.xpose.msra.mxu0 0
        %933 = vmatprep.subr.bf16.mxu0 0
        %934 = vmatpush2.bf16.xpose.msra.mxu0 0
        %935 = vmatprep.subr.bf16.mxu0 0
        %936 = vmatpush2.bf16.xpose.msra.mxu0 0
        %937 = vmatprep.subr.bf16.mxu0 0
        %938 = vmatpush2.bf16.xpose.msra.mxu0 0
        %939 = vmatprep.subr.bf16.mxu0 0
        %940 = vmatpush2.bf16.xpose.msra.mxu0 0
        %941 = vmatprep.subr.bf16.mxu0 0
        %942 = vmatpush2.bf16.xpose.msra.mxu0 0
        %943 = vmatprep.subr.bf16.mxu0 0
        %944 = vmatpush2.bf16.xpose.msra.mxu0 0
        %945 = vmatprep.mubr.bf16.mxu0 0
        %946 = vmatmul.mubr.bf16.gmra.mxu0 %v908
        %v947 = vpop.f32.mrf.mxu0
        %v948 = vadd.f32 0.0, %v947
        %v949 = vpop.f32.mrf.mxu0
        %v950 = vpop.f32.mrf.mxu0
        %v951 = vpop.f32.mrf.mxu0
        %952 = vdwg.mxu0
        %v953 = vsel %vm789, %v948, -1e+30
        %v954 = vsel %vm793, %v953, -inf
        %955 = vmax.xlane.f32.xlu0 %v954
        %v956 = vpop.xlane.xlu0 %955
        %v957 = vsub.f32 %v953, %v956
        %v958 = vmul.f32 %v957, 1.442695
        %v959 = vpow.pop %v958
        %v960 = vsel %vm793, %v959, 0.0
        %961 = vadd.xlane.f32.xlu0 %v960
        %v962 = vpop.xlane.xlu0 %961
        %v963 = vpack.c.bf16 %v959, %v959
        %965 = vrot.lane.b32.xlu0 %v792, 120
        %v966 = vpop.permute.xlu0 %965
        %v968 = vsel %vm793, %v963, 0
        %v971 = vsel %vm854, %v966, 0
        %973 = vmatprep.subr.bf16.mxu0 0
        %974 = vmatpush1.bf16.msra.mxu0 0
        %975 = vmatprep.subr.bf16.mxu0 0
        %976 = vmatpush1.bf16.msra.mxu0 0
        %977 = vmatprep.subr.bf16.mxu0 0
        %978 = vmatpush1.bf16.msra.mxu0 0
        %979 = vmatprep.subr.bf16.mxu0 0
        %980 = vmatpush1.bf16.msra.mxu0 0
        %981 = vmatprep.subr.bf16.mxu0 0
        %982 = vmatpush1.bf16.msra.mxu0 0
        %983 = vmatprep.subr.bf16.mxu0 0
        %984 = vmatpush1.bf16.msra.mxu0 0
        %985 = vmatprep.subr.bf16.mxu0 0
        %986 = vmatpush1.bf16.msra.mxu0 0
        %987 = vmatprep.subr.bf16.mxu0 0
        %988 = vmatpush1.bf16.msra.mxu0 %v971
        %989 = vmatprep.subr.bf16.mxu0 0
        %990 = vmatpush2.bf16.msra.mxu0 0
        %991 = vmatprep.subr.bf16.mxu0 0
        %992 = vmatpush2.bf16.msra.mxu0 0
        %993 = vmatprep.subr.bf16.mxu0 0
        %994 = vmatpush2.bf16.msra.mxu0 0
        %995 = vmatprep.subr.bf16.mxu0 0
        %996 = vmatpush2.bf16.msra.mxu0 0
        %997 = vmatprep.subr.bf16.mxu0 0
        %998 = vmatpush2.bf16.msra.mxu0 0
        %999 = vmatprep.subr.bf16.mxu0 0
        %1000 = vmatpush2.bf16.msra.mxu0 0
        %1001 = vmatprep.subr.bf16.mxu0 0
        %1002 = vmatpush2.bf16.msra.mxu0 0
        %1003 = vmatprep.subr.bf16.mxu0 0
        %1004 = vmatpush2.bf16.msra.mxu0 0
        %1005 = vmatprep.mubr.bf16.mxu0 0
        %1006 = vmatmul.mubr.bf16.gmra.mxu0 %v968
        %v1007 = vpop.f32.mrf.mxu0
        %v1008 = vadd.f32 0.0, %v1007
        %v1009 = vpop.f32.mrf.mxu0
        %v1010 = vpop.f32.mrf.mxu0
        %v1011 = vpop.f32.mrf.mxu0
        %1012 = vdwg.mxu0
        %v1013 = vrcp.pop %v962
        %v1014 = vmul.f32 %v1008, %v1013
        %1016 = vrot.lane.b32.xlu0 %v1014, 8
        %v1017 = vpop.permute.xlu0 %1016
        %vm1019 = vcmask 130112
        %1020 = vst.msk [vmem:[#allocation2] sm:$0xff] %vm1019, %v1017
        %1021 = vrot.lane.b32.xlu0 %v790, 112
        %v1022 = vpop.permute.xlu0 %1021
        %1023 = vrot.lane.b32.xlu0 %v791, 112
        %v1024 = vpop.permute.xlu0 %1023
        %v1026 = vsel %vm793, %v1022, 0
        %v1029 = vsel %vm793, %v1024, 0
        %1031 = vmatprep.subr.bf16.mxu0 0
        %1032 = vmatpush1.bf16.xpose.msra.mxu0 0
        %1033 = vmatprep.subr.bf16.mxu0 0
        %1034 = vmatpush1.bf16.xpose.msra.mxu0 0
        %1035 = vmatprep.subr.bf16.mxu0 0
        %1036 = vmatpush1.bf16.xpose.msra.mxu0 0
        %1037 = vmatprep.subr.bf16.mxu0 0
        %1038 = vmatpush1.bf16.xpose.msra.mxu0 0
        %1039 = vmatprep.subr.bf16.mxu0 0
        %1040 = vmatpush1.bf16.xpose.msra.mxu0 0
        %1041 = vmatprep.subr.bf16.mxu0 0
        %1042 = vmatpush1.bf16.xpose.msra.mxu0 0
        %1043 = vmatprep.subr.bf16.mxu0 0
        %1044 = vmatpush1.bf16.xpose.msra.mxu0 0
        %1045 = vmatprep.subr.bf16.mxu0 0
        %1046 = vmatpush1.bf16.xpose.msra.mxu0 %v1029
        %1047 = vmatprep.subr.bf16.mxu0 0
        %1048 = vmatpush2.bf16.xpose.msra.mxu0 0
        %1049 = vmatprep.subr.bf16.mxu0 0
        %1050 = vmatpush2.bf16.xpose.msra.mxu0 0
        %1051 = vmatprep.subr.bf16.mxu0 0
        %1052 = vmatpush2.bf16.xpose.msra.mxu0 0
        %1053 = vmatprep.subr.bf16.mxu0 0
        %1054 = vmatpush2.bf16.xpose.msra.mxu0 0
        %1055 = vmatprep.subr.bf16.mxu0 0
        %1056 = vmatpush2.bf16.xpose.msra.mxu0 0
        %1057 = vmatprep.subr.bf16.mxu0 0
        %1058 = vmatpush2.bf16.xpose.msra.mxu0 0
        %1059 = vmatprep.subr.bf16.mxu0 0
        %1060 = vmatpush2.bf16.xpose.msra.mxu0 0
        %1061 = vmatprep.subr.bf16.mxu0 0
        %1062 = vmatpush2.bf16.xpose.msra.mxu0 0
        %1063 = vmatprep.mubr.bf16.mxu0 0
        %1064 = vmatmul.mubr.bf16.gmra.mxu0 %v1026
        %v1065 = vpop.f32.mrf.mxu0
        %v1066 = vadd.f32 0.0, %v1065
        %v1067 = vpop.f32.mrf.mxu0
        %v1068 = vpop.f32.mrf.mxu0
        %v1069 = vpop.f32.mrf.mxu0
        %1070 = vdwg.mxu0
        %v1071 = vsel %vm789, %v1066, -1e+30
        %v1072 = vsel %vm793, %v1071, -inf
        %1073 = vmax.xlane.f32.xlu0 %v1072
        %v1074 = vpop.xlane.xlu0 %1073
        %v1075 = vsub.f32 %v1071, %v1074
        %v1076 = vmul.f32 %v1075, 1.442695
        %v1077 = vpow.pop %v1076
        %v1078 = vsel %vm793, %v1077, 0.0
        %1079 = vadd.xlane.f32.xlu0 %v1078
        %v1080 = vpop.xlane.xlu0 %1079
        %v1081 = vpack.c.bf16 %v1077, %v1077
        %1082 = vrot.lane.b32.xlu0 %v792, 112
        %v1083 = vpop.permute.xlu0 %1082
        %v1085 = vsel %vm793, %v1081, 0
        %v1088 = vsel %vm854, %v1083, 0
        %1090 = vmatprep.subr.bf16.mxu0 0
        %1091 = vmatpush1.bf16.msra.mxu0 0
        %1092 = vmatprep.subr.bf16.mxu0 0
        %1093 = vmatpush1.bf16.msra.mxu0 0
        %1094 = vmatprep.subr.bf16.mxu0 0
        %1095 = vmatpush1.bf16.msra.mxu0 0
        %1096 = vmatprep.subr.bf16.mxu0 0
        %1097 = vmatpush1.bf16.msra.mxu0 0
        %1098 = vmatprep.subr.bf16.mxu0 0
        %1099 = vmatpush1.bf16.msra.mxu0 0
        %1100 = vmatprep.subr.bf16.mxu0 0
        %1101 = vmatpush1.bf16.msra.mxu0 0
        %1102 = vmatprep.subr.bf16.mxu0 0
        %1103 = vmatpush1.bf16.msra.mxu0 0
        %1104 = vmatprep.subr.bf16.mxu0 0
        %1105 = vmatpush1.bf16.msra.mxu0 %v1088
        %1106 = vmatprep.subr.bf16.mxu0 0
        %1107 = vmatpush2.bf16.msra.mxu0 0
        %1108 = vmatprep.subr.bf16.mxu0 0
        %1109 = vmatpush2.bf16.msra.mxu0 0
        %1110 = vmatprep.subr.bf16.mxu0 0
        %1111 = vmatpush2.bf16.msra.mxu0 0
        %1112 = vmatprep.subr.bf16.mxu0 0
        %1113 = vmatpush2.bf16.msra.mxu0 0
        %1114 = vmatprep.subr.bf16.mxu0 0
        %1115 = vmatpush2.bf16.msra.mxu0 0
        %1116 = vmatprep.subr.bf16.mxu0 0
        %1117 = vmatpush2.bf16.msra.mxu0 0
        %1118 = vmatprep.subr.bf16.mxu0 0
        %1119 = vmatpush2.bf16.msra.mxu0 0
        %1120 = vmatprep.subr.bf16.mxu0 0
        %1121 = vmatpush2.bf16.msra.mxu0 0
        %1122 = vmatprep.mubr.bf16.mxu0 0
        %1123 = vmatmul.mubr.bf16.gmra.mxu0 %v1085
        %v1124 = vpop.f32.mrf.mxu0
        %v1125 = vadd.f32 0.0, %v1124
        %v1126 = vpop.f32.mrf.mxu0
        %v1127 = vpop.f32.mrf.mxu0
        %v1128 = vpop.f32.mrf.mxu0
        %1129 = vdwg.mxu0
        %v1130 = vrcp.pop %v1080
        %v1131 = vmul.f32 %v1125, %v1130
        %1133 = vrot.lane.b32.xlu0 %v1131, 16
        %v1134 = vpop.permute.xlu0 %1133
        %vm1136 = vcmask 195712
        %1137 = vst.msk [vmem:[#allocation2] sm:$0xff] %vm1136, %v1134
        %1138 = vrot.lane.b32.xlu0 %v790, 104
        %v1139 = vpop.permute.xlu0 %1138
        %1140 = vrot.lane.b32.xlu0 %v791, 104
        %v1141 = vpop.permute.xlu0 %1140
        %v1143 = vsel %vm793, %v1139, 0
        %v1146 = vsel %vm793, %v1141, 0
        %1148 = vmatprep.subr.bf16.mxu0 0
        %1149 = vmatpush1.bf16.xpose.msra.mxu0 0
        %1150 = vmatprep.subr.bf16.mxu0 0
        %1151 = vmatpush1.bf16.xpose.msra.mxu0 0
        %1152 = vmatprep.subr.bf16.mxu0 0
        %1153 = vmatpush1.bf16.xpose.msra.mxu0 0
        %1154 = vmatprep.subr.bf16.mxu0 0
        %1155 = vmatpush1.bf16.xpose.msra.mxu0 0
        %1156 = vmatprep.subr.bf16.mxu0 0
        %1157 = vmatpush1.bf16.xpose.msra.mxu0 0
        %1158 = vmatprep.subr.bf16.mxu0 0
        %1159 = vmatpush1.bf16.xpose.msra.mxu0 0
        %1160 = vmatprep.subr.bf16.mxu0 0
        %1161 = vmatpush1.bf16.xpose.msra.mxu0 0
        %1162 = vmatprep.subr.bf16.mxu0 0
        %1163 = vmatpush1.bf16.xpose.msra.mxu0 %v1146
        %1164 = vmatprep.subr.bf16.mxu0 0
        %1165 = vmatpush2.bf16.xpose.msra.mxu0 0
        %1166 = vmatprep.subr.bf16.mxu0 0
        %1167 = vmatpush2.bf16.xpose.msra.mxu0 0
        %1168 = vmatprep.subr.bf16.mxu0 0
        %1169 = vmatpush2.bf16.xpose.msra.mxu0 0
        %1170 = vmatprep.subr.bf16.mxu0 0
        %1171 = vmatpush2.bf16.xpose.msra.mxu0 0
        %1172 = vmatprep.subr.bf16.mxu0 0
        %1173 = vmatpush2.bf16.xpose.msra.mxu0 0
        %1174 = vmatprep.subr.bf16.mxu0 0
        %1175 = vmatpush2.bf16.xpose.msra.mxu0 0
        %1176 = vmatprep.subr.bf16.mxu0 0
        %1177 = vmatpush2.bf16.xpose.msra.mxu0 0
        %1178 = vmatprep.subr.bf16.mxu0 0
        %1179 = vmatpush2.bf16.xpose.msra.mxu0 0
        %1180 = vmatprep.mubr.bf16.mxu0 0
        %1181 = vmatmul.mubr.bf16.gmra.mxu0 %v1143
        %v1182 = vpop.f32.mrf.mxu0
        %v1183 = vadd.f32 0.0, %v1182
        %v1184 = vpop.f32.mrf.mxu0
        %v1185 = vpop.f32.mrf.mxu0
        %v1186 = vpop.f32.mrf.mxu0
        %1187 = vdwg.mxu0
        %v1188 = vsel %vm789, %v1183, -1e+30
        %v1189 = vsel %vm793, %v1188, -inf
        %1190 = vmax.xlane.f32.xlu0 %v1189
        %v1191 = vpop.xlane.xlu0 %1190
        %v1192 = vsub.f32 %v1188, %v1191
        %v1193 = vmul.f32 %v1192, 1.442695
        %v1194 = vpow.pop %v1193
        %v1195 = vsel %vm793, %v1194, 0.0
        %1196 = vadd.xlane.f32.xlu0 %v1195
        %v1197 = vpop.xlane.xlu0 %1196
        %v1198 = vpack.c.bf16 %v1194, %v1194
        %1199 = vrot.lane.b32.xlu0 %v792, 104
        %v1200 = vpop.permute.xlu0 %1199
        %v1202 = vsel %vm793, %v1198, 0
        %v1205 = vsel %vm854, %v1200, 0
        %1207 = vmatprep.subr.bf16.mxu0 0
        %1208 = vmatpush1.bf16.msra.mxu0 0
        %1209 = vmatprep.subr.bf16.mxu0 0
        %1210 = vmatpush1.bf16.msra.mxu0 0
        %1211 = vmatprep.subr.bf16.mxu0 0
        %1212 = vmatpush1.bf16.msra.mxu0 0
        %1213 = vmatprep.subr.bf16.mxu0 0
        %1214 = vmatpush1.bf16.msra.mxu0 0
        %1215 = vmatprep.subr.bf16.mxu0 0
        %1216 = vmatpush1.bf16.msra.mxu0 0
        %1217 = vmatprep.subr.bf16.mxu0 0
        %1218 = vmatpush1.bf16.msra.mxu0 0
        %1219 = vmatprep.subr.bf16.mxu0 0
        %1220 = vmatpush1.bf16.msra.mxu0 0
        %1221 = vmatprep.subr.bf16.mxu0 0
        %1222 = vmatpush1.bf16.msra.mxu0 %v1205
        %1223 = vmatprep.subr.bf16.mxu0 0
        %1224 = vmatpush2.bf16.msra.mxu0 0
        %1225 = vmatprep.subr.bf16.mxu0 0
        %1226 = vmatpush2.bf16.msra.mxu0 0
        %1227 = vmatprep.subr.bf16.mxu0 0
        %1228 = vmatpush2.bf16.msra.mxu0 0
        %1229 = vmatprep.subr.bf16.mxu0 0
        %1230 = vmatpush2.bf16.msra.mxu0 0
        %1231 = vmatprep.subr.bf16.mxu0 0
        %1232 = vmatpush2.bf16.msra.mxu0 0
        %1233 = vmatprep.subr.bf16.mxu0 0
        %1234 = vmatpush2.bf16.msra.mxu0 0
        %1235 = vmatprep.subr.bf16.mxu0 0
        %1236 = vmatpush2.bf16.msra.mxu0 0
        %1237 = vmatprep.subr.bf16.mxu0 0
        %1238 = vmatpush2.bf16.msra.mxu0 0
        %1239 = vmatprep.mubr.bf16.mxu0 0
        %1240 = vmatmul.mubr.bf16.gmra.mxu0 %v1202
        %v1241 = vpop.f32.mrf.mxu0
        %v1242 = vadd.f32 0.0, %v1241
        %v1243 = vpop.f32.mrf.mxu0
        %v1244 = vpop.f32.mrf.mxu0
        %v1245 = vpop.f32.mrf.mxu0
        %1246 = vdwg.mxu0
        %v1247 = vrcp.pop %v1197
        %v1248 = vmul.f32 %v1242, %v1247
        %1250 = vrot.lane.b32.xlu0 %v1248, 24
        %v1251 = vpop.permute.xlu0 %1250
        %vm1253 = vcmask 261312
        %1254 = vst.msk [vmem:[#allocation2] sm:$0xff] %vm1253, %v1251
        %v1255 = vld [vmem:[#allocation2] sm:$0xff]
        %v1256 = vpack.c.bf16 %v1255, %v1255
        %v1257 = vld [vmem:[%s9] sm:$0xf]
        %v1258 = vld [vmem:[%s9 + $0x4] sm:$0xf]
        %v1259 = vld [vmem:[%s9 + $0x8] sm:$0xf]
        %v1260 = vld [vmem:[%s9 + $0xc] sm:$0xf]
        %v1265 = vunpack.c.l.b16 %v1257
        %v1266 = vunpack.c.l.b16 %v1258
        %v1267 = vunpack.c.l.b16 %v1259
        %v1268 = vunpack.c.l.b16 %v1260
        %v1269 = vpack.c.b16 %v1266, %v1265
        %v1270 = vpack.c.b16 %v1268, %v1267
        %v1274 = vsel %vm563, %v1256, 0
        %1276 = vmatprep.subr.bf16.mxu0 0
        %1277 = vmatpush1.bf16.msra.mxu0 0
        %1278 = vmatprep.subr.bf16.mxu0 0
        %1279 = vmatpush1.bf16.msra.mxu0 0
        %1280 = vmatprep.subr.bf16.mxu0 0
        %1281 = vmatpush1.bf16.msra.mxu0 0
        %1282 = vmatprep.subr.bf16.mxu0 0
        %1283 = vmatpush1.bf16.msra.mxu0 0
        %1284 = vmatprep.subr.bf16.mxu0 0
        %1285 = vmatpush1.bf16.msra.mxu0 0
        %1286 = vmatprep.subr.bf16.mxu0 0
        %1287 = vmatpush1.bf16.msra.mxu0 0
        %1288 = vmatprep.subr.bf16.mxu0 0
        %1289 = vmatpush1.bf16.msra.mxu0 %v1270
        %1290 = vmatprep.subr.bf16.mxu0 0
        %1291 = vmatpush1.bf16.msra.mxu0 %v1269
        %1292 = vmatprep.subr.bf16.mxu0 0
        %1293 = vmatpush2.bf16.msra.mxu0 0
        %1294 = vmatprep.subr.bf16.mxu0 0
        %1295 = vmatpush2.bf16.msra.mxu0 0
        %1296 = vmatprep.subr.bf16.mxu0 0
        %1297 = vmatpush2.bf16.msra.mxu0 0
        %1298 = vmatprep.subr.bf16.mxu0 0
        %1299 = vmatpush2.bf16.msra.mxu0 0
        %1300 = vmatprep.subr.bf16.mxu0 0
        %1301 = vmatpush2.bf16.msra.mxu0 0
        %1302 = vmatprep.subr.bf16.mxu0 0
        %1303 = vmatpush2.bf16.msra.mxu0 0
        %1304 = vmatprep.subr.bf16.mxu0 0
        %1305 = vmatpush2.bf16.msra.mxu0 0
        %1306 = vmatprep.subr.bf16.mxu0 0
        %1307 = vmatpush2.bf16.msra.mxu0 0
        %1308 = vmatprep.mubr.bf16.mxu0 0
        %1309 = vmatmul.mubr.bf16.gmra.mxu0 %v1274
        %v1310 = vpop.f32.mrf.mxu0
        %v1311 = vadd.f32 0.0, %v1310
        %v1312 = vpop.f32.mrf.mxu0
        %v1313 = vpop.f32.mrf.mxu0
        %v1314 = vpop.f32.mrf.mxu0
        %1315 = vdwg.mxu0
        %v1316 = vadd.f32 %v560, %v1311
        %v1317 = vld [vmem:[%s10] sm:$0x1]
        %v1319 = vlaneseq
        %v1320 = vshrl.u32 %v1319, 7
        %v1321 = vsub.s32 0, %v1320
        %v1322 = vrot.slane %v1317, %v1321
        %v1324 = vadd.f32 %v1316, %v1322
        %v1325 = vld [vmem:[%s11] sm:$0x1]
        %v1326 = vld [vmem:[%s12] sm:$0x1]
        %v1327 = vsel %vm563, %v1324, 0.0
        %1328 = vadd.xlane.f32.xlu0 %v1327
        %v1329 = vpop.xlane.xlu0 %1328
        %v1330 = vmul.f32 %v1329, %v567
        %v1331 = vsub.f32 %v1324, %v1330
        %v1332 = vmul.f32 %v1331, %v1331
        %v1333 = vsel %vm563, %v1332, 0.0
        %1334 = vadd.xlane.f32.xlu0 %v1333
        %v1335 = vpop.xlane.xlu0 %1334
        %v1336 = vmul.f32 %v1335, %v567
        %v1337 = vadd.f32 %v1336, 1e-05
        %v1338 = vrsqrt.pop %v1337
        %v1339 = vmul.f32 %v1331, %v1338
        %v1341 = vlaneseq
        %v1342 = vshrl.u32 %v1341, 7
        %v1343 = vsub.s32 0, %v1342
        %v1344 = vrot.slane %v1325, %v1343
        %v1346 = vmul.f32 %v1339, %v1344
        %v1348 = vlaneseq
        %v1349 = vshrl.u32 %v1348, 7
        %v1350 = vsub.s32 0, %v1349
        %v1351 = vrot.slane %v1326, %v1350
        %v1353 = vadd.f32 %v1346, %v1351
        %v1354 = vpack.c.bf16 %v1353, %v1353
        %v1355 = vld [vmem:[#allocation3] sm:$0xf]
        %v1356 = vld [vmem:[#allocation3 + $0x4] sm:$0xf]
        %v1357 = vld [vmem:[#allocation3 + $0x8] sm:$0xf]
        %v1358 = vld [vmem:[#allocation3 + $0xc] sm:$0xf]
        %v1359 = vld [vmem:[%s14] sm:$0x1]
        %v1361 = vlaneseq
        %v1362 = vshrl.u32 %v1361, 7
        %v1363 = vsub.s32 0, %v1362
        %v1364 = vrot.slane %v1359, %v1363
        %v1370 = vunpack.c.l.b16 %v1355
        %v1371 = vunpack.c.l.b16 %v1356
        %v1372 = vunpack.c.l.b16 %v1357
        %v1373 = vunpack.c.l.b16 %v1358
        %v1374 = vpack.c.b16 %v1371, %v1370
        %v1375 = vpack.c.b16 %v1373, %v1372
        %v1379 = vsel %vm563, %v1354, 0
        %1381 = vmatprep.subr.bf16.mxu0 0
        %1382 = vmatpush1.bf16.msra.mxu0 0
        %1383 = vmatprep.subr.bf16.mxu0 0
        %1384 = vmatpush1.bf16.msra.mxu0 0
        %1385 = vmatprep.subr.bf16.mxu0 0
        %1386 = vmatpush1.bf16.msra.mxu0 0
        %1387 = vmatprep.subr.bf16.mxu0 0
        %1388 = vmatpush1.bf16.msra.mxu0 0
        %1389 = vmatprep.subr.bf16.mxu0 0
        %1390 = vmatpush1.bf16.msra.mxu0 0
        %1391 = vmatprep.subr.bf16.mxu0 0
        %1392 = vmatpush1.bf16.msra.mxu0 0
        %1393 = vmatprep.subr.bf16.mxu0 0
        %1394 = vmatpush1.bf16.msra.mxu0 %v1375
        %1395 = vmatprep.subr.bf16.mxu0 0
        %1396 = vmatpush1.bf16.msra.mxu0 %v1374
        %1397 = vmatprep.subr.bf16.mxu0 0
        %1398 = vmatpush2.bf16.msra.mxu0 0
        %1399 = vmatprep.subr.bf16.mxu0 0
        %1400 = vmatpush2.bf16.msra.mxu0 0
        %1401 = vmatprep.subr.bf16.mxu0 0
        %1402 = vmatpush2.bf16.msra.mxu0 0
        %1403 = vmatprep.subr.bf16.mxu0 0
        %1404 = vmatpush2.bf16.msra.mxu0 0
        %1405 = vmatprep.subr.bf16.mxu0 0
        %1406 = vmatpush2.bf16.msra.mxu0 0
        %1407 = vmatprep.subr.bf16.mxu0 0
        %1408 = vmatpush2.bf16.msra.mxu0 0
        %1409 = vmatprep.subr.bf16.mxu0 0
        %1410 = vmatpush2.bf16.msra.mxu0 0
        %1411 = vmatprep.subr.bf16.mxu0 0
        %1412 = vmatpush2.bf16.msra.mxu0 0
        %1413 = vmatprep.mubr.bf16.mxu0 0
        %1414 = vmatmul.mubr.bf16.gmra.mxu0 %v1379
        %v1415 = vpop.f32.mrf.mxu0
        %v1416 = vadd.f32 %v1364, %v1415
        %v1417 = vpop.f32.mrf.mxu0
        %v1418 = vpop.f32.mrf.mxu0
        %v1419 = vpop.f32.mrf.mxu0
        %1420 = vdwg.mxu0
        %v1421 = vmul.f32 %v1416, 0.5
        %v1422 = vmul.f32 %v1416, 0.044715
        %v1423 = vmul.f32 %v1422, %v1416
        %v1424 = vmul.f32 %v1423, %v1416
        %v1425 = vadd.f32 %v1416, %v1424
        %v1426 = vmul.f32 %v1425, 0.7978846
        %v1427 = vtanh.pop %v1426
        %v1428 = vadd.f32 %v1427, 1.0
        %v1429 = vmul.f32 %v1421, %v1428
        %v1430 = vpack.c.bf16 %v1429, %v1429
        %v1431 = vld [vmem:[%s15] sm:$0xf]
        %v1432 = vld [vmem:[%s15 + $0x4] sm:$0xf]
        %v1433 = vld [vmem:[%s15 + $0x8] sm:$0xf]
        %v1434 = vld [vmem:[%s15 + $0xc] sm:$0xf]
        %v1435 = vld [vmem:[%s15 + $0x10] sm:$0xf]
        %v1436 = vld [vmem:[%s15 + $0x14] sm:$0xf]
        %v1437 = vld [vmem:[%s15 + $0x18] sm:$0xf]
        %v1438 = vld [vmem:[%s15 + $0x1c] sm:$0xf]
        %v1439 = vld [vmem:[%s15 + $0x20] sm:$0xf]
        %v1440 = vld [vmem:[%s15 + $0x24] sm:$0xf]
        %v1441 = vld [vmem:[%s15 + $0x28] sm:$0xf]
        %v1442 = vld [vmem:[%s15 + $0x2c] sm:$0xf]
        %v1443 = vld [vmem:[%s15 + $0x30] sm:$0xf]
        %v1444 = vld [vmem:[%s15 + $0x34] sm:$0xf]
        %v1445 = vld [vmem:[%s15 + $0x38] sm:$0xf]
        %v1446 = vld [vmem:[%s15 + $0x3c] sm:$0xf]
        %v1463 = vunpack.c.l.b16 %v1431
        %v1464 = vunpack.c.l.b16 %v1432
        %v1465 = vunpack.c.l.b16 %v1433
        %v1466 = vunpack.c.l.b16 %v1434
        %v1467 = vunpack.c.l.b16 %v1435
        %v1468 = vunpack.c.l.b16 %v1436
        %v1469 = vunpack.c.l.b16 %v1437
        %v1470 = vunpack.c.l.b16 %v1438
        %v1471 = vunpack.c.l.b16 %v1439
        %v1472 = vunpack.c.l.b16 %v1440
        %v1473 = vunpack.c.l.b16 %v1441
        %v1474 = vunpack.c.l.b16 %v1442
        %v1475 = vunpack.c.l.b16 %v1443
        %v1476 = vunpack.c.l.b16 %v1444
        %v1477 = vunpack.c.l.b16 %v1445
        %v1478 = vunpack.c.l.b16 %v1446
        %v1479 = vpack.c.b16 %v1464, %v1463
        %v1480 = vpack.c.b16 %v1466, %v1465
        %v1481 = vpack.c.b16 %v1468, %v1467
        %v1482 = vpack.c.b16 %v1470, %v1469
        %v1483 = vpack.c.b16 %v1472, %v1471
        %v1484 = vpack.c.b16 %v1474, %v1473
        %v1485 = vpack.c.b16 %v1476, %v1475
        %v1486 = vpack.c.b16 %v1478, %v1477
        %1495 = vmatprep.subr.bf16.mxu0 0
        %1496 = vmatpush1.bf16.msra.mxu0 %v1486
        %1497 = vmatprep.subr.bf16.mxu0 0
        %1498 = vmatpush1.bf16.msra.mxu0 %v1485
        %1499 = vmatprep.subr.bf16.mxu0 0
        %1500 = vmatpush1.bf16.msra.mxu0 %v1484
        %1501 = vmatprep.subr.bf16.mxu0 0
        %1502 = vmatpush1.bf16.msra.mxu0 %v1483
        %1503 = vmatprep.subr.bf16.mxu0 0
        %1504 = vmatpush1.bf16.msra.mxu0 %v1482
        %1505 = vmatprep.subr.bf16.mxu0 0
        %1506 = vmatpush1.bf16.msra.mxu0 %v1481
        %1507 = vmatprep.subr.bf16.mxu0 0
        %1508 = vmatpush1.bf16.msra.mxu0 %v1480
        %1509 = vmatprep.subr.bf16.mxu0 0
        %1510 = vmatpush1.bf16.msra.mxu0 %v1479
        %1511 = vmatprep.subr.bf16.mxu0 0
        %1512 = vmatpush2.bf16.msra.mxu0 0
        %1513 = vmatprep.subr.bf16.mxu0 0
        %1514 = vmatpush2.bf16.msra.mxu0 0
        %1515 = vmatprep.subr.bf16.mxu0 0
        %1516 = vmatpush2.bf16.msra.mxu0 0
        %1517 = vmatprep.subr.bf16.mxu0 0
        %1518 = vmatpush2.bf16.msra.mxu0 0
        %1519 = vmatprep.subr.bf16.mxu0 0
        %1520 = vmatpush2.bf16.msra.mxu0 0
        %1521 = vmatprep.subr.bf16.mxu0 0
        %1522 = vmatpush2.bf16.msra.mxu0 0
        %1523 = vmatprep.subr.bf16.mxu0 0
        %1524 = vmatpush2.bf16.msra.mxu0 0
        %1525 = vmatprep.subr.bf16.mxu0 0
        %1526 = vmatpush2.bf16.msra.mxu0 0
        %1527 = vmatprep.mubr.bf16.mxu0 0
        %1528 = vmatmul.mubr.bf16.gmra.mxu0 %v1430
        %v1529 = vpop.f32.mrf.mxu0
        %v1530 = vadd.f32 0.0, %v1529
        %v1531 = vpop.f32.mrf.mxu0
        %v1532 = vpop.f32.mrf.mxu0
        %v1533 = vpop.f32.mrf.mxu0
        %1534 = vdwg.mxu0
        %v1535 = vadd.f32 %v1324, %v1530
        %v1536 = vld [vmem:[%s16] sm:$0x1]
        %v1538 = vlaneseq
        %v1539 = vshrl.u32 %v1538, 7
        %v1540 = vsub.s32 0, %v1539
        %v1541 = vrot.slane %v1536, %v1540
        %v1543 = vadd.f32 %v1535, %v1541
        %1544 = vst.msk [vmem:[%s554] sm:$0xff] %vm563, %v1543
        %s1545 = sand.u32 %s402, 1
        %s1546 = scalar_lea.sflag [#allocation5], %s1545
        %s1547 = sand.u32 %s402, 1
        %s1548 = smul.addr %s1547, 8
        %s1549 = scalar_lea.vmem [#allocation6], %s1548
        // Predicated region
        $region93: #{tpu_custom_call.1} parent=87 // pred_check
          %p1550 = pneg %p412
        $region94: #{tpu_custom_call.1} parent=87 // pred_check_branch
          %1552 = sbr.rel (%p1550) target = $region96
        $region95: #{tpu_custom_call.1} parent=87 // pred_region
          %s1554 = ssub.s32 128, 128
          %1555 = vsyncadd %s1546, %s1554
          %s1556 = smul.addr %s32, 128
          %s1557 = scalar_lea.hbm %s17, %s1556
          %s1559 = sshll.u32 %s1549, 4
          %s1560 = int_to_ptr.vmem [resolvable:$true] %s1559
          %1562 = dma.vmem_to_hbm [thread:$0]  %s1560, 128, %s1557, %s1546
        $region96: #{tpu_custom_call.1} parent=87 // pred_fallthru
          _
      $region88: #{tpu_custom_call.1} parent=5 // pred_fallthru
        _
      %p1563 = scmp.le.s32.totalorder 2, %s27
      // Predicated region
      $region97: #{tpu_custom_call.1} parent=5 // pred_check
        %p1564 = pneg %p1563
      $region98: #{tpu_custom_call.1} parent=5 // pred_check_branch
        %1566 = sbr.rel (%p1564) target = $region100
      $region99: #{tpu_custom_call.1} parent=5 // pred_region
        %s1567 = ssub.s32 %s27, 2
        // Predicated region
        $region101: #{tpu_custom_call.1} parent=99 // pred_check
          %p1568 = pneg %p418
        $region102: #{tpu_custom_call.1} parent=99 // pred_check_branch
          %1570 = sbr.rel (%p1568) target = $region104
        $region103: #{tpu_custom_call.1} parent=99 // pred_region
          %s1571 = sand.u32 %s403, 1
          %s1572 = scalar_lea.sflag [#allocation5], %s1571
          %s1573 = sand.u32 %s403, 1
          %s1574 = smul.addr %s1573, 8
          %s1575 = scalar_lea.vmem [#allocation6], %s1574
          %1576 = dma.done %s1572, 128
        $region104: #{tpu_custom_call.1} parent=99 // pred_fallthru
          _
      $region100: #{tpu_custom_call.1} parent=5 // pred_fallthru
        _
    $region6: #{tpu_custom_call.1} parent=1 // loop_footer
      %s31 = sadd.s32 1, %s27
    $region7: #{tpu_custom_call.1} parent=1 // loop_footer_branch
      %26 = sbr.rel target = $region3
    $region8: #{tpu_custom_call.1} parent=1 // loop_exit
      _
    %1577 = vsyncpa [#allocation4], 1
    %s1578 = scalar_lea.sflag [#allocation4], 1
    %1579 = vsyncpa %s1578, 1
    %1580 = vsyncpa [#allocation5], 1
    %s1581 = scalar_lea.sflag [#allocation5], 1
    %1582 = vsyncpa %s1581, 1

</llo_original>
